<compile_context>
chip_gen: v7x
topology: tpu7x:2x2x1
jax: 0.10.0
libtpu: 0.0.40
codegen_flags: <defaults>
</compile_context>

<pallas_src>
import functools
import jax
import jax.numpy as jnp
from jax import lax
from jax.experimental import pallas as pl
from jax.experimental.pallas import tpu as pltpu

HP = 128   # padded LSTM hidden size (one full lane width per gate)
FP = 128   # padded FC hidden size


def _sigmoid(v):
    # exact; tanh goes to the EUP slot, no f32 divide on the recurrent chain
    return 0.5 * (jnp.tanh(0.5 * v) + 1.0)


# --------------------------- fused LSTM + head kernel ---------------------- #
def fused_rnn_kernel(ids_ref, len_ref, tbl_ref, whh_ref,
                     w1_ref, b1_ref, w2_ref, b2_ref, out_ref, xw_scr,
                     *, T, BT, VP):
    # (1) Fused embedding lookup + input projection, hoisted out of the
    #     recurrence: one-hot(ids) @ (emb @ W_ih^T + bias) on the MXU.
    ids = ids_ref[...]                                        # (T*BT, 1) int32, time-major
    onehot = (lax.broadcasted_iota(jnp.int32, (T * BT, VP), 1) == ids
              ).astype(jnp.float32)                           # (T*BT, VP)
    xw_scr[...] = jnp.dot(onehot, tbl_ref[...],
                          preferred_element_type=jnp.float32)  # (T*BT, 4*HP)

    lengths = len_ref[...]                                    # (BT, 1) int32

    # (2) Sequential LSTM recurrence: only h @ W_hh per step.  W_hh is read
    #     from VMEM inside the step (keeping it in vregs would be 64 vregs).
    def step(t, carry):
        h, c = carry
        row = pl.multiple_of(t * BT, BT)
        gates = xw_scr[pl.ds(row, BT), :] + jnp.dot(
            h, whh_ref[...], preferred_element_type=jnp.float32)   # (BT, 4*HP)
        # PyTorch gate order i, f, g, o; every slice is lane-aligned (HP=128).
        sig_if = _sigmoid(gates[:, 0 * HP:2 * HP])            # i|f in one full-width push
        i = sig_if[:, :HP]
        f = sig_if[:, HP:]
        g = jnp.tanh(gates[:, 2 * HP:3 * HP])
        o = _sigmoid(gates[:, 3 * HP:4 * HP])
        c_new = f * c + i * g
        h_new = o * jnp.tanh(c_new)
        keep = t < lengths                                    # packed-sequence freeze
        return jnp.where(keep, h_new, h), jnp.where(keep, c_new, c)

    h0 = jnp.zeros((BT, HP), jnp.float32)
    c0 = jnp.zeros((BT, HP), jnp.float32)
    # TODO(synk): for production-length T switch to a partial unroll (4-8).
    h_last, _ = lax.fori_loop(0, T, step, (h0, c0), unroll=True)

    # (3) Fused MLP head: FC1 -> ReLU -> FC2 (lane reduction) -> Sigmoid.
    h1 = jnp.maximum(
        jnp.dot(h_last, w1_ref[...], preferred_element_type=jnp.float32)
        + b1_ref[...], 0.0)                                   # (BT, FP)
    z = jnp.sum(h1 * w2_ref[...], axis=-1, keepdims=True) + b2_ref[...]
    out_ref[...] = _sigmoid(z)                                # (BT, 1)


def rnn_fused_call(ids, len_t, tbl, whh, w1, b1, w2, b2, *, T, B, BT):
    VP, G4 = tbl.shape                                        # (VOCAB_P, 4*HP)
    nbt = B // BT
    kernel = functools.partial(fused_rnn_kernel, T=T, BT=BT, VP=VP)
    return pl.pallas_call(
        kernel,
        out_shape=jax.ShapeDtypeStruct((B, 1), jnp.float32),
        grid_spec=pltpu.PrefetchScalarGridSpec(
            num_scalar_prefetch=0,
            grid=(nbt,),                                       # parallel over batch tiles
            in_specs=[
                pl.BlockSpec((None, T * BT, 1), lambda i: (i, 0, 0)),  # token ids (time-major)
                pl.BlockSpec((None, BT, 1), lambda i: (i, 0, 0)),      # lengths
                pl.BlockSpec((VP, G4), lambda i: (0, 0)),              # emb @ W_ih^T + bias (padded)
                pl.BlockSpec((HP, G4), lambda i: (0, 0)),              # W_hh^T (padded)
                pl.BlockSpec((HP, FP), lambda i: (0, 0)),              # W1^T (padded)
                pl.BlockSpec((1, FP), lambda i: (0, 0)),               # b1 (padded)
                pl.BlockSpec((1, FP), lambda i: (0, 0)),               # W2 row (out=1, padded)
                pl.BlockSpec((1, 1), lambda i: (0, 0)),                # b2
            ],
            out_specs=pl.BlockSpec((BT, 1), lambda i: (i, 0)),
            scratch_shapes=[pltpu.VMEM((T * BT, G4), jnp.float32)],
        ),
        compiler_params=pltpu.CompilerParams(
            dimension_semantics=("parallel",)),
    )(ids, len_t, tbl, whh, w1, b1, w2, b2)


# --------------------------- param packing (one-time) ---------------------- #
def pack_params(emb, w_ih, w_hh, b_ih, b_hh, w1, b1, w2, b2):
    V = emb.shape[0]
    H = w_hh.shape[1]
    F = w1.shape[0]
    VP = ((max(V, 128) + 127) // 128) * 128                   # lane-dense one-hot width

    def pad_gate_cols(m):   # (rows, 4H) -> (rows, 4*HP), per-gate zero pad
        out = jnp.zeros((m.shape[0], 4 * HP), jnp.float32)
        for g in range(4):
            out = out.at[:, g * HP:g * HP + H].set(m[:, g * H:(g + 1) * H])
        return out

    bias = (b_ih + b_hh)[None, :]                              # (1, 4H)
    # pre-projected, bias-folded embedding table (padding_idx row 0 -> bias only,
    # exactly matching x=0 in the reference recurrence)
    tbl = emb @ w_ih.T + bias                                  # (V, 4H)
    tbl_p = jnp.zeros((VP, 4 * HP), jnp.float32).at[:V].set(pad_gate_cols(tbl))
    whh_p = jnp.zeros((HP, 4 * HP), jnp.float32).at[:H].set(pad_gate_cols(w_hh.T))
    w1_p = jnp.zeros((HP, FP), jnp.float32).at[:H, :F].set(w1.T)
    b1_p = jnp.zeros((1, FP), jnp.float32).at[:, :F].set(b1[None, :])
    w2_p = jnp.zeros((1, FP), jnp.float32).at[:, :F].set(w2)
    b2_p = b2[None, :]
    return dict(tbl=tbl_p, whh=whh_p, w1=w1_p, b1=b1_p, w2=w2_p, b2=b2_p)


# --------------------------- full forward pass ----------------------------- #
@jax.jit
def rnn_forward(text, lengths, kparams):
    B, T = text.shape
    BT = B if B < 8 else 8                                     # batch tile (8 sublanes)
    nbt = B // BT
    # Rearrange the tiny int32 ids into per-batch-tile, time-major rows
    # (row = t*BT + b).  The f32 embedding gather/projection now lives in-kernel.
    ids = (text.astype(jnp.int32)
           .reshape(nbt, BT, T).transpose(0, 2, 1).reshape(nbt, T * BT, 1))
    len_t = lengths.astype(jnp.int32).reshape(nbt, BT, 1)
    return rnn_fused_call(ids, len_t,
                          kparams["tbl"], kparams["whh"],
                          kparams["w1"], kparams["b1"],
                          kparams["w2"], kparams["b2"],
                          T=T, B=B, BT=BT)


# ---------------------------- pure-JAX reference --------------------------- #
def rnn_forward_ref(text, lengths, params):
    emb = jnp.take(params["emb"], text, axis=0)               # (B, T, E)
    B, T, _ = emb.shape
    H = params["whh_t"].shape[0]
    h0 = jnp.zeros((B, H), jnp.float32)
    c0 = jnp.zeros((B, H), jnp.float32)

    def step(carry, inp):
        h, c = carry
        t, x = inp
        gates = x @ params["wih_t"] + h @ params["whh_t"] + params["bias"]
        i = jax.nn.sigmoid(gates[:, 0 * H:1 * H])
        f = jax.nn.sigmoid(gates[:, 1 * H:2 * H])
        g = jnp.tanh(gates[:, 2 * H:3 * H])
        o = jax.nn.sigmoid(gates[:, 3 * H:4 * H])
        c_new = f * c + i * g
        h_new = o * jnp.tanh(c_new)
        mask = (t < lengths)[:, None]
        return (jnp.where(mask, h_new, h), jnp.where(mask, c_new, c)), None

    (h, _), _ = lax.scan(step, (h0, c0),
                         (jnp.arange(T), jnp.transpose(emb, (1, 0, 2))))
    h1 = jnp.maximum(h @ params["w1_t"] + params["b1"], 0.0)
    return jax.nn.sigmoid(h1 @ params["w2_row"].T + params["b2"])


# --------------------------------- main ------------------------------------ #
if __name__ == "__main__":
    VOCAB, EMBED, HIDDEN, FC = 50, 32, 32, 32
    B, T = 8, 8

    key = jax.random.PRNGKey(0)
    ks = jax.random.split(key, 10)

    emb = 0.1 * jax.random.normal(ks[0], (VOCAB, EMBED), jnp.float32)
    emb = emb.at[0].set(0.0)                                  # padding_idx=0

    w_ih = 0.1 * jax.random.normal(ks[1], (4 * HIDDEN, EMBED), jnp.float32)
    w_hh = 0.1 * jax.random.normal(ks[2], (4 * HIDDEN, HIDDEN), jnp.float32)
    b_ih = 0.1 * jax.random.normal(ks[3], (4 * HIDDEN,), jnp.float32)
    b_hh = 0.1 * jax.random.normal(ks[4], (4 * HIDDEN,), jnp.float32)

    w1 = 0.1 * jax.random.normal(ks[5], (FC, HIDDEN), jnp.float32)
    b1 = 0.1 * jax.random.normal(ks[6], (FC,), jnp.float32)
    w2 = 0.1 * jax.random.normal(ks[7], (1, FC), jnp.float32)
    b2 = 0.1 * jax.random.normal(ks[8], (1,), jnp.float32)

    # padded / pre-projected params for the fused kernel (one-time packing)
    kparams = pack_params(emb, w_ih, w_hh, b_ih, b_hh, w1, b1, w2, b2)

    # original-layout params for the pure-JAX reference
    ref_params = dict(
        emb=emb,
        wih_t=w_ih.T,                       # (E, 4H)
        whh_t=w_hh.T,                       # (H, 4H)
        bias=(b_ih + b_hh)[None, :],        # (1, 4H)
        w1_t=w1.T, b1=b1[None, :],          # (H, FC), (1, FC)
        w2_row=w2, b2=b2[None, :],          # (1, FC), (1, 1)
    )

    text = jax.random.randint(ks[9], (B, T), 1, VOCAB, dtype=jnp.int32)
    lengths = jnp.array([8, 5, 3, 8, 1, 6, 7, 2], jnp.int32)
    # zero out padded positions (as a dataloader would), token id 0 = pad
    pad_mask = jnp.arange(T)[None, :] < lengths[:, None]
    text = jnp.where(pad_mask, text, 0)

    out = jax.block_until_ready(rnn_forward(text, lengths, kparams))
    ref = jax.block_until_ready(rnn_forward_ref(text, lengths, ref_params))

    assert out.shape == (B, 1)
    assert jnp.max(jnp.abs(out - ref)) < 1e-4, "mismatch vs reference"
    print("KERNEL_OK")
</pallas_src>

<mosaic_0001>
module attributes {stable_mosaic.version = 11 : i64} {
  func.func @fused_rnn_kernel(%arg0: i32, %arg1: memref<1x64x1xi32, #tpu.memory_space<vmem>>, %arg2: memref<1x8x1xi32, #tpu.memory_space<vmem>>, %arg3: memref<128x512xf32, #tpu.memory_space<vmem>>, %arg4: memref<128x512xf32, #tpu.memory_space<vmem>>, %arg5: memref<128x128xf32, #tpu.memory_space<vmem>>, %arg6: memref<1x128xf32, #tpu.memory_space<vmem>>, %arg7: memref<1x128xf32, #tpu.memory_space<vmem>>, %arg8: memref<1x1xf32, #tpu.memory_space<vmem>>, %arg9: memref<8x1xf32, #tpu.memory_space<vmem>>, %arg10: memref<64x512xf32, #tpu.memory_space<vmem>>) attributes {dimension_semantics = [#tpu.dimension_semantics<parallel>], iteration_bounds = array<i64: 1>, scalar_prefetch = 0 : i64, scratch_operands = 1 : i64, tpu.core_type = #tpu.core_type<tc>, window_params = [{transform_indices = @transform_0, window_bounds = array<i64: 1, 64, 1>}, {transform_indices = @transform_1, window_bounds = array<i64: 1, 8, 1>}, {pipeline_mode = #tpu.pipeline_mode<synchronous>, transform_indices = @transform_2, window_bounds = array<i64: 128, 512>}, {pipeline_mode = #tpu.pipeline_mode<synchronous>, transform_indices = @transform_3, window_bounds = array<i64: 128, 512>}, {pipeline_mode = #tpu.pipeline_mode<synchronous>, transform_indices = @transform_4, window_bounds = array<i64: 128, 128>}, {pipeline_mode = #tpu.pipeline_mode<synchronous>, transform_indices = @transform_5, window_bounds = array<i64: 1, 128>}, {pipeline_mode = #tpu.pipeline_mode<synchronous>, transform_indices = @transform_6, window_bounds = array<i64: 1, 128>}, {pipeline_mode = #tpu.pipeline_mode<synchronous>, transform_indices = @transform_7, window_bounds = array<i64: 1, 1>}, {transform_indices = @transform_8, window_bounds = array<i64: 8, 1>}]} {
    %c0 = arith.constant 0 : index
    %c0_0 = arith.constant 0 : index
    %c0_1 = arith.constant 0 : index
    %0 = vector.load %arg1[%c0, %c0_0, %c0_1] : memref<1x64x1xi32, #tpu.memory_space<vmem>>, vector<1x64x1xi32>
    %1 = vector.shape_cast %0 : vector<1x64x1xi32> to vector<64x1xi32>
    %2 = tpu.iota {dimensions = array<i32: 1>} : vector<64x128xi32>
    %3 = vector.broadcast %1 : vector<64x1xi32> to vector<64x128xi32>
    %4 = arith.cmpi eq, %2, %3 : vector<64x128xi32>
    %5 = arith.extui %4 : vector<64x128xi1> to vector<64x128xi32>
    %6 = arith.sitofp %5 : vector<64x128xi32> to vector<64x128xf32>
    %c0_2 = arith.constant 0 : index
    %c0_3 = arith.constant 0 : index
    %7 = vector.load %arg3[%c0_2, %c0_3] : memref<128x512xf32, #tpu.memory_space<vmem>>, vector<128x512xf32>
    %cst = arith.constant dense<0.000000e+00> : vector<64x512xf32>
    %8 = tpu.matmul %6, %7, %cst {dimension_numbers = #tpu.dot_dimension_numbers<[1], [0], [0], [1], [0, 0, 1, 1], [], []>} : vector<64x128xf32>, vector<128x512xf32>, vector<64x512xf32> -> vector<64x512xf32>
    %c0_4 = arith.constant 0 : index
    %c0_5 = arith.constant 0 : index
    %9 = vector.load %arg10[%c0_4, %c0_5] : memref<64x512xf32, #tpu.memory_space<vmem>>, vector<64x512xf32>
    tpu.vector_store %arg10[%c0_4, %c0_5], %8 {strides = array<i32>} : memref<64x512xf32, #tpu.memory_space<vmem>>, vector<64x512xf32>,
    %c0_6 = arith.constant 0 : index
    %c0_7 = arith.constant 0 : index
    %c0_8 = arith.constant 0 : index
    %10 = vector.load %arg2[%c0_6, %c0_7, %c0_8] : memref<1x8x1xi32, #tpu.memory_space<vmem>>, vector<1x8x1xi32>
    %11 = vector.shape_cast %10 : vector<1x8x1xi32> to vector<8x1xi32>
    %cst_9 = arith.constant 0.000000e+00 : f32
    %12 = vector.broadcast %cst_9 : f32 to vector<8x128xf32>
    %cst_10 = arith.constant 0.000000e+00 : f32
    %13 = vector.broadcast %cst_10 : f32 to vector<8x128xf32>
    %c0_i32 = arith.constant 0 : i32
    %c8_i32 = arith.constant 8 : i32
    %14 = arith.muli %c0_i32, %c8_i32 : i32
    %15 = tpu.assume_multiple %14, 8 : i32
    %16 = arith.index_cast %15 : i32 to index
    %c0_11 = arith.constant 0 : index
    %17 = vector.load %arg10[%16, %c0_11] : memref<64x512xf32, #tpu.memory_space<vmem>>, vector<8x512xf32>
    %c0_12 = arith.constant 0 : index
    %c0_13 = arith.constant 0 : index
    %18 = vector.load %arg4[%c0_12, %c0_13] : memref<128x512xf32, #tpu.memory_space<vmem>>, vector<128x512xf32>
    %cst_14 = arith.constant dense<0.000000e+00> : vector<8x512xf32>
    %19 = tpu.matmul %12, %18, %cst_14 {dimension_numbers = #tpu.dot_dimension_numbers<[1], [0], [0], [1], [0, 0, 1, 1], [], []>} : vector<8x128xf32>, vector<128x512xf32>, vector<8x512xf32> -> vector<8x512xf32>
    %20 = arith.addf %17, %19 : vector<8x512xf32>
    %21 = vector.extract_strided_slice %20 {offsets = [0, 0], sizes = [8, 256], strides = [1, 1]} : vector<8x512xf32> to vector<8x256xf32>
    %cst_15 = arith.constant 5.000000e-01 : f32
    %22 = vector.broadcast %cst_15 : f32 to vector<8x256xf32>
    %23 = arith.mulf %22, %21 : vector<8x256xf32>
    %24 = math.tanh %23 : vector<8x256xf32>
    %cst_16 = arith.constant 1.000000e+00 : f32
    %25 = vector.broadcast %cst_16 : f32 to vector<8x256xf32>
    %26 = arith.addf %24, %25 : vector<8x256xf32>
    %cst_17 = arith.constant 5.000000e-01 : f32
    %27 = vector.broadcast %cst_17 : f32 to vector<8x256xf32>
    %28 = arith.mulf %27, %26 : vector<8x256xf32>
    %29 = vector.extract_strided_slice %28 {offsets = [0, 0], sizes = [8, 128], strides = [1, 1]} : vector<8x256xf32> to vector<8x128xf32>
    %30 = vector.extract_strided_slice %28 {offsets = [0, 128], sizes = [8, 128], strides = [1, 1]} : vector<8x256xf32> to vector<8x128xf32>
    %31 = vector.extract_strided_slice %20 {offsets = [0, 256], sizes = [8, 128], strides = [1, 1]} : vector<8x512xf32> to vector<8x128xf32>
    %32 = math.tanh %31 : vector<8x128xf32>
    %33 = vector.extract_strided_slice %20 {offsets = [0, 384], sizes = [8, 128], strides = [1, 1]} : vector<8x512xf32> to vector<8x128xf32>
    %cst_18 = arith.constant 5.000000e-01 : f32
    %34 = vector.broadcast %cst_18 : f32 to vector<8x128xf32>
    %35 = arith.mulf %34, %33 : vector<8x128xf32>
    %36 = math.tanh %35 : vector<8x128xf32>
    %cst_19 = arith.constant 1.000000e+00 : f32
    %37 = vector.broadcast %cst_19 : f32 to vector<8x128xf32>
    %38 = arith.addf %36, %37 : vector<8x128xf32>
    %cst_20 = arith.constant 5.000000e-01 : f32
    %39 = vector.broadcast %cst_20 : f32 to vector<8x128xf32>
    %40 = arith.mulf %39, %38 : vector<8x128xf32>
    %41 = arith.mulf %30, %13 : vector<8x128xf32>
    %42 = arith.mulf %29, %32 : vector<8x128xf32>
    %43 = arith.addf %41, %42 : vector<8x128xf32>
    %44 = math.tanh %43 : vector<8x128xf32>
    %45 = arith.mulf %40, %44 : vector<8x128xf32>
    %46 = vector.broadcast %c0_i32 : i32 to vector<8x1xi32>
    %47 = arith.cmpi slt, %46, %11 : vector<8x1xi32>
    %48 = vector.shape_cast %47 : vector<8x1xi1> to vector<8x1xi1>
    %49 = vector.broadcast %48 : vector<8x1xi1> to vector<8x128xi1>
    %50 = arith.select %49, %45, %12 : vector<8x128xi1>, vector<8x128xf32>
    %51 = vector.shape_cast %47 : vector<8x1xi1> to vector<8x1xi1>
    %52 = vector.broadcast %51 : vector<8x1xi1> to vector<8x128xi1>
    %53 = arith.select %52, %43, %13 : vector<8x128xi1>, vector<8x128xf32>
    %c1_i32 = arith.constant 1 : i32
    %c8_i32_21 = arith.constant 8 : i32
    %54 = arith.muli %c1_i32, %c8_i32_21 : i32
    %55 = tpu.assume_multiple %54, 8 : i32
    %56 = arith.index_cast %55 : i32 to index
    %c0_22 = arith.constant 0 : index
    %57 = vector.load %arg10[%56, %c0_22] : memref<64x512xf32, #tpu.memory_space<vmem>>, vector<8x512xf32>
    %c0_23 = arith.constant 0 : index
    %c0_24 = arith.constant 0 : index
    %58 = vector.load %arg4[%c0_23, %c0_24] : memref<128x512xf32, #tpu.memory_space<vmem>>, vector<128x512xf32>
    %cst_25 = arith.constant dense<0.000000e+00> : vector<8x512xf32>
    %59 = tpu.matmul %50, %58, %cst_25 {dimension_numbers = #tpu.dot_dimension_numbers<[1], [0], [0], [1], [0, 0, 1, 1], [], []>} : vector<8x128xf32>, vector<128x512xf32>, vector<8x512xf32> -> vector<8x512xf32>
    %60 = arith.addf %57, %59 : vector<8x512xf32>
    %61 = vector.extract_strided_slice %60 {offsets = [0, 0], sizes = [8, 256], strides = [1, 1]} : vector<8x512xf32> to vector<8x256xf32>
    %cst_26 = arith.constant 5.000000e-01 : f32
    %62 = vector.broadcast %cst_26 : f32 to vector<8x256xf32>
    %63 = arith.mulf %62, %61 : vector<8x256xf32>
    %64 = math.tanh %63 : vector<8x256xf32>
    %cst_27 = arith.constant 1.000000e+00 : f32
    %65 = vector.broadcast %cst_27 : f32 to vector<8x256xf32>
    %66 = arith.addf %64, %65 : vector<8x256xf32>
    %cst_28 = arith.constant 5.000000e-01 : f32
    %67 = vector.broadcast %cst_28 : f32 to vector<8x256xf32>
    %68 = arith.mulf %67, %66 : vector<8x256xf32>
    %69 = vector.extract_strided_slice %68 {offsets = [0, 0], sizes = [8, 128], strides = [1, 1]} : vector<8x256xf32> to vector<8x128xf32>
    %70 = vector.extract_strided_slice %68 {offsets = [0, 128], sizes = [8, 128], strides = [1, 1]} : vector<8x256xf32> to vector<8x128xf32>
    %71 = vector.extract_strided_slice %60 {offsets = [0, 256], sizes = [8, 128], strides = [1, 1]} : vector<8x512xf32> to vector<8x128xf32>
    %72 = math.tanh %71 : vector<8x128xf32>
    %73 = vector.extract_strided_slice %60 {offsets = [0, 384], sizes = [8, 128], strides = [1, 1]} : vector<8x512xf32> to vector<8x128xf32>
    %cst_29 = arith.constant 5.000000e-01 : f32
    %74 = vector.broadcast %cst_29 : f32 to vector<8x128xf32>
    %75 = arith.mulf %74, %73 : vector<8x128xf32>
    %76 = math.tanh %75 : vector<8x128xf32>
    %cst_30 = arith.constant 1.000000e+00 : f32
    %77 = vector.broadcast %cst_30 : f32 to vector<8x128xf32>
    %78 = arith.addf %76, %77 : vector<8x128xf32>
    %cst_31 = arith.constant 5.000000e-01 : f32
    %79 = vector.broadcast %cst_31 : f32 to vector<8x128xf32>
    %80 = arith.mulf %79, %78 : vector<8x128xf32>
    %81 = arith.mulf %70, %53 : vector<8x128xf32>
    %82 = arith.mulf %69, %72 : vector<8x128xf32>
    %83 = arith.addf %81, %82 : vector<8x128xf32>
    %84 = math.tanh %83 : vector<8x128xf32>
    %85 = arith.mulf %80, %84 : vector<8x128xf32>
    %86 = vector.broadcast %c1_i32 : i32 to vector<8x1xi32>
    %87 = arith.cmpi slt, %86, %11 : vector<8x1xi32>
    %88 = vector.shape_cast %87 : vector<8x1xi1> to vector<8x1xi1>
    %89 = vector.broadcast %88 : vector<8x1xi1> to vector<8x128xi1>
    %90 = arith.select %89, %85, %50 : vector<8x128xi1>, vector<8x128xf32>
    %91 = vector.shape_cast %87 : vector<8x1xi1> to vector<8x1xi1>
    %92 = vector.broadcast %91 : vector<8x1xi1> to vector<8x128xi1>
    %93 = arith.select %92, %83, %53 : vector<8x128xi1>, vector<8x128xf32>
    %c2_i32 = arith.constant 2 : i32
    %c8_i32_32 = arith.constant 8 : i32
    %94 = arith.muli %c2_i32, %c8_i32_32 : i32
    %95 = tpu.assume_multiple %94, 8 : i32
    %96 = arith.index_cast %95 : i32 to index
    %c0_33 = arith.constant 0 : index
    %97 = vector.load %arg10[%96, %c0_33] : memref<64x512xf32, #tpu.memory_space<vmem>>, vector<8x512xf32>
    %c0_34 = arith.constant 0 : index
    %c0_35 = arith.constant 0 : index
    %98 = vector.load %arg4[%c0_34, %c0_35] : memref<128x512xf32, #tpu.memory_space<vmem>>, vector<128x512xf32>
    %cst_36 = arith.constant dense<0.000000e+00> : vector<8x512xf32>
    %99 = tpu.matmul %90, %98, %cst_36 {dimension_numbers = #tpu.dot_dimension_numbers<[1], [0], [0], [1], [0, 0, 1, 1], [], []>} : vector<8x128xf32>, vector<128x512xf32>, vector<8x512xf32> -> vector<8x512xf32>
    %100 = arith.addf %97, %99 : vector<8x512xf32>
    %101 = vector.extract_strided_slice %100 {offsets = [0, 0], sizes = [8, 256], strides = [1, 1]} : vector<8x512xf32> to vector<8x256xf32>
    %cst_37 = arith.constant 5.000000e-01 : f32
    %102 = vector.broadcast %cst_37 : f32 to vector<8x256xf32>
    %103 = arith.mulf %102, %101 : vector<8x256xf32>
    %104 = math.tanh %103 : vector<8x256xf32>
    %cst_38 = arith.constant 1.000000e+00 : f32
    %105 = vector.broadcast %cst_38 : f32 to vector<8x256xf32>
    %106 = arith.addf %104, %105 : vector<8x256xf32>
    %cst_39 = arith.constant 5.000000e-01 : f32
    %107 = vector.broadcast %cst_39 : f32 to vector<8x256xf32>
    %108 = arith.mulf %107, %106 : vector<8x256xf32>
    %109 = vector.extract_strided_slice %108 {offsets = [0, 0], sizes = [8, 128], strides = [1, 1]} : vector<8x256xf32> to vector<8x128xf32>
    %110 = vector.extract_strided_slice %108 {offsets = [0, 128], sizes = [8, 128], strides = [1, 1]} : vector<8x256xf32> to vector<8x128xf32>
    %111 = vector.extract_strided_slice %100 {offsets = [0, 256], sizes = [8, 128], strides = [1, 1]} : vector<8x512xf32> to vector<8x128xf32>
    %112 = math.tanh %111 : vector<8x128xf32>
    %113 = vector.extract_strided_slice %100 {offsets = [0, 384], sizes = [8, 128], strides = [1, 1]} : vector<8x512xf32> to vector<8x128xf32>
    %cst_40 = arith.constant 5.000000e-01 : f32
    %114 = vector.broadcast %cst_40 : f32 to vector<8x128xf32>
    %115 = arith.mulf %114, %113 : vector<8x128xf32>
    %116 = math.tanh %115 : vector<8x128xf32>
    %cst_41 = arith.constant 1.000000e+00 : f32
    %117 = vector.broadcast %cst_41 : f32 to vector<8x128xf32>
    %118 = arith.addf %116, %117 : vector<8x128xf32>
    %cst_42 = arith.constant 5.000000e-01 : f32
    %119 = vector.broadcast %cst_42 : f32 to vector<8x128xf32>
    %120 = arith.mulf %119, %118 : vector<8x128xf32>
    %121 = arith.mulf %110, %93 : vector<8x128xf32>
    %122 = arith.mulf %109, %112 : vector<8x128xf32>
    %123 = arith.addf %121, %122 : vector<8x128xf32>
    %124 = math.tanh %123 : vector<8x128xf32>
    %125 = arith.mulf %120, %124 : vector<8x128xf32>
    %126 = vector.broadcast %c2_i32 : i32 to vector<8x1xi32>
    %127 = arith.cmpi slt, %126, %11 : vector<8x1xi32>
    %128 = vector.shape_cast %127 : vector<8x1xi1> to vector<8x1xi1>
    %129 = vector.broadcast %128 : vector<8x1xi1> to vector<8x128xi1>
    %130 = arith.select %129, %125, %90 : vector<8x128xi1>, vector<8x128xf32>
    %131 = vector.shape_cast %127 : vector<8x1xi1> to vector<8x1xi1>
    %132 = vector.broadcast %131 : vector<8x1xi1> to vector<8x128xi1>
    %133 = arith.select %132, %123, %93 : vector<8x128xi1>, vector<8x128xf32>
    %c3_i32 = arith.constant 3 : i32
    %c8_i32_43 = arith.constant 8 : i32
    %134 = arith.muli %c3_i32, %c8_i32_43 : i32
    %135 = tpu.assume_multiple %134, 8 : i32
    %136 = arith.index_cast %135 : i32 to index
    %c0_44 = arith.constant 0 : index
    %137 = vector.load %arg10[%136, %c0_44] : memref<64x512xf32, #tpu.memory_space<vmem>>, vector<8x512xf32>
    %c0_45 = arith.constant 0 : index
    %c0_46 = arith.constant 0 : index
    %138 = vector.load %arg4[%c0_45, %c0_46] : memref<128x512xf32, #tpu.memory_space<vmem>>, vector<128x512xf32>
    %cst_47 = arith.constant dense<0.000000e+00> : vector<8x512xf32>
    %139 = tpu.matmul %130, %138, %cst_47 {dimension_numbers = #tpu.dot_dimension_numbers<[1], [0], [0], [1], [0, 0, 1, 1], [], []>} : vector<8x128xf32>, vector<128x512xf32>, vector<8x512xf32> -> vector<8x512xf32>
    %140 = arith.addf %137, %139 : vector<8x512xf32>
    %141 = vector.extract_strided_slice %140 {offsets = [0, 0], sizes = [8, 256], strides = [1, 1]} : vector<8x512xf32> to vector<8x256xf32>
    %cst_48 = arith.constant 5.000000e-01 : f32
    %142 = vector.broadcast %cst_48 : f32 to vector<8x256xf32>
    %143 = arith.mulf %142, %141 : vector<8x256xf32>
    %144 = math.tanh %143 : vector<8x256xf32>
    %cst_49 = arith.constant 1.000000e+00 : f32
    %145 = vector.broadcast %cst_49 : f32 to vector<8x256xf32>
    %146 = arith.addf %144, %145 : vector<8x256xf32>
    %cst_50 = arith.constant 5.000000e-01 : f32
    %147 = vector.broadcast %cst_50 : f32 to vector<8x256xf32>
    %148 = arith.mulf %147, %146 : vector<8x256xf32>
    %149 = vector.extract_strided_slice %148 {offsets = [0, 0], sizes = [8, 128], strides = [1, 1]} : vector<8x256xf32> to vector<8x128xf32>
    %150 = vector.extract_strided_slice %148 {offsets = [0, 128], sizes = [8, 128], strides = [1, 1]} : vector<8x256xf32> to vector<8x128xf32>
    %151 = vector.extract_strided_slice %140 {offsets = [0, 256], sizes = [8, 128], strides = [1, 1]} : vector<8x512xf32> to vector<8x128xf32>
    %152 = math.tanh %151 : vector<8x128xf32>
    %153 = vector.extract_strided_slice %140 {offsets = [0, 384], sizes = [8, 128], strides = [1, 1]} : vector<8x512xf32> to vector<8x128xf32>
    %cst_51 = arith.constant 5.000000e-01 : f32
    %154 = vector.broadcast %cst_51 : f32 to vector<8x128xf32>
    %155 = arith.mulf %154, %153 : vector<8x128xf32>
    %156 = math.tanh %155 : vector<8x128xf32>
    %cst_52 = arith.constant 1.000000e+00 : f32
    %157 = vector.broadcast %cst_52 : f32 to vector<8x128xf32>
    %158 = arith.addf %156, %157 : vector<8x128xf32>
    %cst_53 = arith.constant 5.000000e-01 : f32
    %159 = vector.broadcast %cst_53 : f32 to vector<8x128xf32>
    %160 = arith.mulf %159, %158 : vector<8x128xf32>
    %161 = arith.mulf %150, %133 : vector<8x128xf32>
    %162 = arith.mulf %149, %152 : vector<8x128xf32>
    %163 = arith.addf %161, %162 : vector<8x128xf32>
    %164 = math.tanh %163 : vector<8x128xf32>
    %165 = arith.mulf %160, %164 : vector<8x128xf32>
    %166 = vector.broadcast %c3_i32 : i32 to vector<8x1xi32>
    %167 = arith.cmpi slt, %166, %11 : vector<8x1xi32>
    %168 = vector.shape_cast %167 : vector<8x1xi1> to vector<8x1xi1>
    %169 = vector.broadcast %168 : vector<8x1xi1> to vector<8x128xi1>
    %170 = arith.select %169, %165, %130 : vector<8x128xi1>, vector<8x128xf32>
    %171 = vector.shape_cast %167 : vector<8x1xi1> to vector<8x1xi1>
    %172 = vector.broadcast %171 : vector<8x1xi1> to vector<8x128xi1>
    %173 = arith.select %172, %163, %133 : vector<8x128xi1>, vector<8x128xf32>
    %c4_i32 = arith.constant 4 : i32
    %c8_i32_54 = arith.constant 8 : i32
    %174 = arith.muli %c4_i32, %c8_i32_54 : i32
    %175 = tpu.assume_multiple %174, 8 : i32
    %176 = arith.index_cast %175 : i32 to index
    %c0_55 = arith.constant 0 : index
    %177 = vector.load %arg10[%176, %c0_55] : memref<64x512xf32, #tpu.memory_space<vmem>>, vector<8x512xf32>
    %c0_56 = arith.constant 0 : index
    %c0_57 = arith.constant 0 : index
    %178 = vector.load %arg4[%c0_56, %c0_57] : memref<128x512xf32, #tpu.memory_space<vmem>>, vector<128x512xf32>
    %cst_58 = arith.constant dense<0.000000e+00> : vector<8x512xf32>
    %179 = tpu.matmul %170, %178, %cst_58 {dimension_numbers = #tpu.dot_dimension_numbers<[1], [0], [0], [1], [0, 0, 1, 1], [], []>} : vector<8x128xf32>, vector<128x512xf32>, vector<8x512xf32> -> vector<8x512xf32>
    %180 = arith.addf %177, %179 : vector<8x512xf32>
    %181 = vector.extract_strided_slice %180 {offsets = [0, 0], sizes = [8, 256], strides = [1, 1]} : vector<8x512xf32> to vector<8x256xf32>
    %cst_59 = arith.constant 5.000000e-01 : f32
    %182 = vector.broadcast %cst_59 : f32 to vector<8x256xf32>
    %183 = arith.mulf %182, %181 : vector<8x256xf32>
    %184 = math.tanh %183 : vector<8x256xf32>
    %cst_60 = arith.constant 1.000000e+00 : f32
    %185 = vector.broadcast %cst_60 : f32 to vector<8x256xf32>
    %186 = arith.addf %184, %185 : vector<8x256xf32>
    %cst_61 = arith.constant 5.000000e-01 : f32
    %187 = vector.broadcast %cst_61 : f32 to vector<8x256xf32>
    %188 = arith.mulf %187, %186 : vector<8x256xf32>
    %189 = vector.extract_strided_slice %188 {offsets = [0, 0], sizes = [8, 128], strides = [1, 1]} : vector<8x256xf32> to vector<8x128xf32>
    %190 = vector.extract_strided_slice %188 {offsets = [0, 128], sizes = [8, 128], strides = [1, 1]} : vector<8x256xf32> to vector<8x128xf32>
    %191 = vector.extract_strided_slice %180 {offsets = [0, 256], sizes = [8, 128], strides = [1, 1]} : vector<8x512xf32> to vector<8x128xf32>
    %192 = math.tanh %191 : vector<8x128xf32>
    %193 = vector.extract_strided_slice %180 {offsets = [0, 384], sizes = [8, 128], strides = [1, 1]} : vector<8x512xf32> to vector<8x128xf32>
    %cst_62 = arith.constant 5.000000e-01 : f32
    %194 = vector.broadcast %cst_62 : f32 to vector<8x128xf32>
    %195 = arith.mulf %194, %193 : vector<8x128xf32>
    %196 = math.tanh %195 : vector<8x128xf32>
    %cst_63 = arith.constant 1.000000e+00 : f32
    %197 = vector.broadcast %cst_63 : f32 to vector<8x128xf32>
    %198 = arith.addf %196, %197 : vector<8x128xf32>
    %cst_64 = arith.constant 5.000000e-01 : f32
    %199 = vector.broadcast %cst_64 : f32 to vector<8x128xf32>
    %200 = arith.mulf %199, %198 : vector<8x128xf32>
    %201 = arith.mulf %190, %173 : vector<8x128xf32>
    %202 = arith.mulf %189, %192 : vector<8x128xf32>
    %203 = arith.addf %201, %202 : vector<8x128xf32>
    %204 = math.tanh %203 : vector<8x128xf32>
    %205 = arith.mulf %200, %204 : vector<8x128xf32>
    %206 = vector.broadcast %c4_i32 : i32 to vector<8x1xi32>
    %207 = arith.cmpi slt, %206, %11 : vector<8x1xi32>
    %208 = vector.shape_cast %207 : vector<8x1xi1> to vector<8x1xi1>
    %209 = vector.broadcast %208 : vector<8x1xi1> to vector<8x128xi1>
    %210 = arith.select %209, %205, %170 : vector<8x128xi1>, vector<8x128xf32>
    %211 = vector.shape_cast %207 : vector<8x1xi1> to vector<8x1xi1>
    %212 = vector.broadcast %211 : vector<8x1xi1> to vector<8x128xi1>
    %213 = arith.select %212, %203, %173 : vector<8x128xi1>, vector<8x128xf32>
    %c5_i32 = arith.constant 5 : i32
    %c8_i32_65 = arith.constant 8 : i32
    %214 = arith.muli %c5_i32, %c8_i32_65 : i32
    %215 = tpu.assume_multiple %214, 8 : i32
    %216 = arith.index_cast %215 : i32 to index
    %c0_66 = arith.constant 0 : index
    %217 = vector.load %arg10[%216, %c0_66] : memref<64x512xf32, #tpu.memory_space<vmem>>, vector<8x512xf32>
    %c0_67 = arith.constant 0 : index
    %c0_68 = arith.constant 0 : index
    %218 = vector.load %arg4[%c0_67, %c0_68] : memref<128x512xf32, #tpu.memory_space<vmem>>, vector<128x512xf32>
    %cst_69 = arith.constant dense<0.000000e+00> : vector<8x512xf32>
    %219 = tpu.matmul %210, %218, %cst_69 {dimension_numbers = #tpu.dot_dimension_numbers<[1], [0], [0], [1], [0, 0, 1, 1], [], []>} : vector<8x128xf32>, vector<128x512xf32>, vector<8x512xf32> -> vector<8x512xf32>
    %220 = arith.addf %217, %219 : vector<8x512xf32>
    %221 = vector.extract_strided_slice %220 {offsets = [0, 0], sizes = [8, 256], strides = [1, 1]} : vector<8x512xf32> to vector<8x256xf32>
    %cst_70 = arith.constant 5.000000e-01 : f32
    %222 = vector.broadcast %cst_70 : f32 to vector<8x256xf32>
    %223 = arith.mulf %222, %221 : vector<8x256xf32>
    %224 = math.tanh %223 : vector<8x256xf32>
    %cst_71 = arith.constant 1.000000e+00 : f32
    %225 = vector.broadcast %cst_71 : f32 to vector<8x256xf32>
    %226 = arith.addf %224, %225 : vector<8x256xf32>
    %cst_72 = arith.constant 5.000000e-01 : f32
    %227 = vector.broadcast %cst_72 : f32 to vector<8x256xf32>
    %228 = arith.mulf %227, %226 : vector<8x256xf32>
    %229 = vector.extract_strided_slice %228 {offsets = [0, 0], sizes = [8, 128], strides = [1, 1]} : vector<8x256xf32> to vector<8x128xf32>
    %230 = vector.extract_strided_slice %228 {offsets = [0, 128], sizes = [8, 128], strides = [1, 1]} : vector<8x256xf32> to vector<8x128xf32>
    %231 = vector.extract_strided_slice %220 {offsets = [0, 256], sizes = [8, 128], strides = [1, 1]} : vector<8x512xf32> to vector<8x128xf32>
    %232 = math.tanh %231 : vector<8x128xf32>
    %233 = vector.extract_strided_slice %220 {offsets = [0, 384], sizes = [8, 128], strides = [1, 1]} : vector<8x512xf32> to vector<8x128xf32>
    %cst_73 = arith.constant 5.000000e-01 : f32
    %234 = vector.broadcast %cst_73 : f32 to vector<8x128xf32>
    %235 = arith.mulf %234, %233 : vector<8x128xf32>
    %236 = math.tanh %235 : vector<8x128xf32>
    %cst_74 = arith.constant 1.000000e+00 : f32
    %237 = vector.broadcast %cst_74 : f32 to vector<8x128xf32>
    %238 = arith.addf %236, %237 : vector<8x128xf32>
    %cst_75 = arith.constant 5.000000e-01 : f32
    %239 = vector.broadcast %cst_75 : f32 to vector<8x128xf32>
    %240 = arith.mulf %239, %238 : vector<8x128xf32>
    %241 = arith.mulf %230, %213 : vector<8x128xf32>
    %242 = arith.mulf %229, %232 : vector<8x128xf32>
    %243 = arith.addf %241, %242 : vector<8x128xf32>
    %244 = math.tanh %243 : vector<8x128xf32>
    %245 = arith.mulf %240, %244 : vector<8x128xf32>
    %246 = vector.broadcast %c5_i32 : i32 to vector<8x1xi32>
    %247 = arith.cmpi slt, %246, %11 : vector<8x1xi32>
    %248 = vector.shape_cast %247 : vector<8x1xi1> to vector<8x1xi1>
    %249 = vector.broadcast %248 : vector<8x1xi1> to vector<8x128xi1>
    %250 = arith.select %249, %245, %210 : vector<8x128xi1>, vector<8x128xf32>
    %251 = vector.shape_cast %247 : vector<8x1xi1> to vector<8x1xi1>
    %252 = vector.broadcast %251 : vector<8x1xi1> to vector<8x128xi1>
    %253 = arith.select %252, %243, %213 : vector<8x128xi1>, vector<8x128xf32>
    %c6_i32 = arith.constant 6 : i32
    %c8_i32_76 = arith.constant 8 : i32
    %254 = arith.muli %c6_i32, %c8_i32_76 : i32
    %255 = tpu.assume_multiple %254, 8 : i32
    %256 = arith.index_cast %255 : i32 to index
    %c0_77 = arith.constant 0 : index
    %257 = vector.load %arg10[%256, %c0_77] : memref<64x512xf32, #tpu.memory_space<vmem>>, vector<8x512xf32>
    %c0_78 = arith.constant 0 : index
    %c0_79 = arith.constant 0 : index
    %258 = vector.load %arg4[%c0_78, %c0_79] : memref<128x512xf32, #tpu.memory_space<vmem>>, vector<128x512xf32>
    %cst_80 = arith.constant dense<0.000000e+00> : vector<8x512xf32>
    %259 = tpu.matmul %250, %258, %cst_80 {dimension_numbers = #tpu.dot_dimension_numbers<[1], [0], [0], [1], [0, 0, 1, 1], [], []>} : vector<8x128xf32>, vector<128x512xf32>, vector<8x512xf32> -> vector<8x512xf32>
    %260 = arith.addf %257, %259 : vector<8x512xf32>
    %261 = vector.extract_strided_slice %260 {offsets = [0, 0], sizes = [8, 256], strides = [1, 1]} : vector<8x512xf32> to vector<8x256xf32>
    %cst_81 = arith.constant 5.000000e-01 : f32
    %262 = vector.broadcast %cst_81 : f32 to vector<8x256xf32>
    %263 = arith.mulf %262, %261 : vector<8x256xf32>
    %264 = math.tanh %263 : vector<8x256xf32>
    %cst_82 = arith.constant 1.000000e+00 : f32
    %265 = vector.broadcast %cst_82 : f32 to vector<8x256xf32>
    %266 = arith.addf %264, %265 : vector<8x256xf32>
    %cst_83 = arith.constant 5.000000e-01 : f32
    %267 = vector.broadcast %cst_83 : f32 to vector<8x256xf32>
    %268 = arith.mulf %267, %266 : vector<8x256xf32>
    %269 = vector.extract_strided_slice %268 {offsets = [0, 0], sizes = [8, 128], strides = [1, 1]} : vector<8x256xf32> to vector<8x128xf32>
    %270 = vector.extract_strided_slice %268 {offsets = [0, 128], sizes = [8, 128], strides = [1, 1]} : vector<8x256xf32> to vector<8x128xf32>
    %271 = vector.extract_strided_slice %260 {offsets = [0, 256], sizes = [8, 128], strides = [1, 1]} : vector<8x512xf32> to vector<8x128xf32>
    %272 = math.tanh %271 : vector<8x128xf32>
    %273 = vector.extract_strided_slice %260 {offsets = [0, 384], sizes = [8, 128], strides = [1, 1]} : vector<8x512xf32> to vector<8x128xf32>
    %cst_84 = arith.constant 5.000000e-01 : f32
    %274 = vector.broadcast %cst_84 : f32 to vector<8x128xf32>
    %275 = arith.mulf %274, %273 : vector<8x128xf32>
    %276 = math.tanh %275 : vector<8x128xf32>
    %cst_85 = arith.constant 1.000000e+00 : f32
    %277 = vector.broadcast %cst_85 : f32 to vector<8x128xf32>
    %278 = arith.addf %276, %277 : vector<8x128xf32>
    %cst_86 = arith.constant 5.000000e-01 : f32
    %279 = vector.broadcast %cst_86 : f32 to vector<8x128xf32>
    %280 = arith.mulf %279, %278 : vector<8x128xf32>
    %281 = arith.mulf %270, %253 : vector<8x128xf32>
    %282 = arith.mulf %269, %272 : vector<8x128xf32>
    %283 = arith.addf %281, %282 : vector<8x128xf32>
    %284 = math.tanh %283 : vector<8x128xf32>
    %285 = arith.mulf %280, %284 : vector<8x128xf32>
    %286 = vector.broadcast %c6_i32 : i32 to vector<8x1xi32>
    %287 = arith.cmpi slt, %286, %11 : vector<8x1xi32>
    %288 = vector.shape_cast %287 : vector<8x1xi1> to vector<8x1xi1>
    %289 = vector.broadcast %288 : vector<8x1xi1> to vector<8x128xi1>
    %290 = arith.select %289, %285, %250 : vector<8x128xi1>, vector<8x128xf32>
    %291 = vector.shape_cast %287 : vector<8x1xi1> to vector<8x1xi1>
    %292 = vector.broadcast %291 : vector<8x1xi1> to vector<8x128xi1>
    %293 = arith.select %292, %283, %253 : vector<8x128xi1>, vector<8x128xf32>
    %c7_i32 = arith.constant 7 : i32
    %c8_i32_87 = arith.constant 8 : i32
    %294 = arith.muli %c7_i32, %c8_i32_87 : i32
    %295 = tpu.assume_multiple %294, 8 : i32
    %296 = arith.index_cast %295 : i32 to index
    %c0_88 = arith.constant 0 : index
    %297 = vector.load %arg10[%296, %c0_88] : memref<64x512xf32, #tpu.memory_space<vmem>>, vector<8x512xf32>
    %c0_89 = arith.constant 0 : index
    %c0_90 = arith.constant 0 : index
    %298 = vector.load %arg4[%c0_89, %c0_90] : memref<128x512xf32, #tpu.memory_space<vmem>>, vector<128x512xf32>
    %cst_91 = arith.constant dense<0.000000e+00> : vector<8x512xf32>
    %299 = tpu.matmul %290, %298, %cst_91 {dimension_numbers = #tpu.dot_dimension_numbers<[1], [0], [0], [1], [0, 0, 1, 1], [], []>} : vector<8x128xf32>, vector<128x512xf32>, vector<8x512xf32> -> vector<8x512xf32>
    %300 = arith.addf %297, %299 : vector<8x512xf32>
    %301 = vector.extract_strided_slice %300 {offsets = [0, 0], sizes = [8, 256], strides = [1, 1]} : vector<8x512xf32> to vector<8x256xf32>
    %cst_92 = arith.constant 5.000000e-01 : f32
    %302 = vector.broadcast %cst_92 : f32 to vector<8x256xf32>
    %303 = arith.mulf %302, %301 : vector<8x256xf32>
    %304 = math.tanh %303 : vector<8x256xf32>
    %cst_93 = arith.constant 1.000000e+00 : f32
    %305 = vector.broadcast %cst_93 : f32 to vector<8x256xf32>
    %306 = arith.addf %304, %305 : vector<8x256xf32>
    %cst_94 = arith.constant 5.000000e-01 : f32
    %307 = vector.broadcast %cst_94 : f32 to vector<8x256xf32>
    %308 = arith.mulf %307, %306 : vector<8x256xf32>
    %309 = vector.extract_strided_slice %308 {offsets = [0, 0], sizes = [8, 128], strides = [1, 1]} : vector<8x256xf32> to vector<8x128xf32>
    %310 = vector.extract_strided_slice %308 {offsets = [0, 128], sizes = [8, 128], strides = [1, 1]} : vector<8x256xf32> to vector<8x128xf32>
    %311 = vector.extract_strided_slice %300 {offsets = [0, 256], sizes = [8, 128], strides = [1, 1]} : vector<8x512xf32> to vector<8x128xf32>
    %312 = math.tanh %311 : vector<8x128xf32>
    %313 = vector.extract_strided_slice %300 {offsets = [0, 384], sizes = [8, 128], strides = [1, 1]} : vector<8x512xf32> to vector<8x128xf32>
    %cst_95 = arith.constant 5.000000e-01 : f32
    %314 = vector.broadcast %cst_95 : f32 to vector<8x128xf32>
    %315 = arith.mulf %314, %313 : vector<8x128xf32>
    %316 = math.tanh %315 : vector<8x128xf32>
    %cst_96 = arith.constant 1.000000e+00 : f32
    %317 = vector.broadcast %cst_96 : f32 to vector<8x128xf32>
    %318 = arith.addf %316, %317 : vector<8x128xf32>
    %cst_97 = arith.constant 5.000000e-01 : f32
    %319 = vector.broadcast %cst_97 : f32 to vector<8x128xf32>
    %320 = arith.mulf %319, %318 : vector<8x128xf32>
    %321 = arith.mulf %310, %293 : vector<8x128xf32>
    %322 = arith.mulf %309, %312 : vector<8x128xf32>
    %323 = arith.addf %321, %322 : vector<8x128xf32>
    %324 = math.tanh %323 : vector<8x128xf32>
    %325 = arith.mulf %320, %324 : vector<8x128xf32>
    %326 = vector.broadcast %c7_i32 : i32 to vector<8x1xi32>
    %327 = arith.cmpi slt, %326, %11 : vector<8x1xi32>
    %328 = vector.shape_cast %327 : vector<8x1xi1> to vector<8x1xi1>
    %329 = vector.broadcast %328 : vector<8x1xi1> to vector<8x128xi1>
    %330 = arith.select %329, %325, %290 : vector<8x128xi1>, vector<8x128xf32>
    %331 = vector.shape_cast %327 : vector<8x1xi1> to vector<8x1xi1>
    %332 = vector.broadcast %331 : vector<8x1xi1> to vector<8x128xi1>
    %333 = arith.select %332, %323, %293 : vector<8x128xi1>, vector<8x128xf32>
    %c8_i32_98 = arith.constant 8 : i32
    %c0_99 = arith.constant 0 : index
    %c0_100 = arith.constant 0 : index
    %334 = vector.load %arg5[%c0_99, %c0_100] : memref<128x128xf32, #tpu.memory_space<vmem>>, vector<128x128xf32>
    %cst_101 = arith.constant dense<0.000000e+00> : vector<8x128xf32>
    %335 = tpu.matmul %330, %334, %cst_101 {dimension_numbers = #tpu.dot_dimension_numbers<[1], [0], [0], [1], [0, 0, 1, 1], [], []>} : vector<8x128xf32>, vector<128x128xf32>, vector<8x128xf32> -> vector<8x128xf32>
    %c0_102 = arith.constant 0 : index
    %c0_103 = arith.constant 0 : index
    %336 = vector.load %arg6[%c0_102, %c0_103] : memref<1x128xf32, #tpu.memory_space<vmem>>, vector<1x128xf32>
    %337 = vector.broadcast %336 : vector<1x128xf32> to vector<8x128xf32>
    %338 = arith.addf %335, %337 : vector<8x128xf32>
    %cst_104 = arith.constant 0.000000e+00 : f32
    %339 = vector.broadcast %cst_104 : f32 to vector<8x128xf32>
    %340 = arith.maximumf %338, %339 : vector<8x128xf32>
    %c0_105 = arith.constant 0 : index
    %c0_106 = arith.constant 0 : index
    %341 = vector.load %arg7[%c0_105, %c0_106] : memref<1x128xf32, #tpu.memory_space<vmem>>, vector<1x128xf32>
    %342 = vector.broadcast %341 : vector<1x128xf32> to vector<8x128xf32>
    %343 = arith.mulf %340, %342 : vector<8x128xf32>
    %cst_107 = arith.constant dense<0.000000e+00> : vector<8xf32>
    %344 = vector.multi_reduction <add>, %343, %cst_107 [1] : vector<8x128xf32> to vector<8xf32>
    %345 = vector.shape_cast %344 : vector<8xf32> to vector<8x1xf32>
    %c0_108 = arith.constant 0 : index
    %c0_109 = arith.constant 0 : index
    %346 = vector.load %arg8[%c0_108, %c0_109] : memref<1x1xf32, #tpu.memory_space<vmem>>, vector<1x1xf32>
    %347 = vector.broadcast %346 : vector<1x1xf32> to vector<8x1xf32>
    %348 = arith.addf %345, %347 : vector<8x1xf32>
    %cst_110 = arith.constant 5.000000e-01 : f32
    %349 = vector.broadcast %cst_110 : f32 to vector<8x1xf32>
    %350 = arith.mulf %349, %348 : vector<8x1xf32>
    %351 = math.tanh %350 : vector<8x1xf32>
    %cst_111 = arith.constant 1.000000e+00 : f32
    %352 = vector.broadcast %cst_111 : f32 to vector<8x1xf32>
    %353 = arith.addf %351, %352 : vector<8x1xf32>
    %cst_112 = arith.constant 5.000000e-01 : f32
    %354 = vector.broadcast %cst_112 : f32 to vector<8x1xf32>
    %355 = arith.mulf %354, %353 : vector<8x1xf32>
    %c0_113 = arith.constant 0 : index
    %c0_114 = arith.constant 0 : index
    %356 = vector.load %arg9[%c0_113, %c0_114] : memref<8x1xf32, #tpu.memory_space<vmem>>, vector<8x1xf32>
    tpu.vector_store %arg9[%c0_113, %c0_114], %355 {strides = array<i32>} : memref<8x1xf32, #tpu.memory_space<vmem>>, vector<8x1xf32>,
    return
  }
  func.func @transform_0(%arg0: i32) -> (i32, i32, i32) {
    %c0_i32 = arith.constant 0 : i32
    %c0_i32_0 = arith.constant 0 : i32
    %c0_i32_1 = arith.constant 0 : i32
    return %arg0, %c0_i32, %c0_i32_0 : i32, i32, i32
  }
  func.func @transform_1(%arg0: i32) -> (i32, i32, i32) {
    %c0_i32 = arith.constant 0 : i32
    %c0_i32_0 = arith.constant 0 : i32
    %c0_i32_1 = arith.constant 0 : i32
    return %arg0, %c0_i32, %c0_i32_0 : i32, i32, i32
  }
  func.func @transform_2(%arg0: i32) -> (i32, i32) {
    %c0_i32 = arith.constant 0 : i32
    %c0_i32_0 = arith.constant 0 : i32
    %c0_i32_1 = arith.constant 0 : i32
    return %c0_i32, %c0_i32_0 : i32, i32
  }
  func.func @transform_3(%arg0: i32) -> (i32, i32) {
    %c0_i32 = arith.constant 0 : i32
    %c0_i32_0 = arith.constant 0 : i32
    %c0_i32_1 = arith.constant 0 : i32
    return %c0_i32, %c0_i32_0 : i32, i32
  }
  func.func @transform_4(%arg0: i32) -> (i32, i32) {
    %c0_i32 = arith.constant 0 : i32
    %c0_i32_0 = arith.constant 0 : i32
    %c0_i32_1 = arith.constant 0 : i32
    return %c0_i32, %c0_i32_0 : i32, i32
  }
  func.func @transform_5(%arg0: i32) -> (i32, i32) {
    %c0_i32 = arith.constant 0 : i32
    %c0_i32_0 = arith.constant 0 : i32
    %c0_i32_1 = arith.constant 0 : i32
    return %c0_i32, %c0_i32_0 : i32, i32
  }
  func.func @transform_6(%arg0: i32) -> (i32, i32) {
    %c0_i32 = arith.constant 0 : i32
    %c0_i32_0 = arith.constant 0 : i32
    %c0_i32_1 = arith.constant 0 : i32
    return %c0_i32, %c0_i32_0 : i32, i32
  }
  func.func @transform_7(%arg0: i32) -> (i32, i32) {
    %c0_i32 = arith.constant 0 : i32
    %c0_i32_0 = arith.constant 0 : i32
    %c0_i32_1 = arith.constant 0 : i32
    return %c0_i32, %c0_i32_0 : i32, i32
  }
  func.func @transform_8(%arg0: i32) -> (i32, i32) {
    %c0_i32 = arith.constant 0 : i32
    %c0_i32_0 = arith.constant 0 : i32
    return %arg0, %c0_i32 : i32, i32
  }
}

</mosaic_0001>

<llo_original>
// kernel: rnn_forward.1
$region0: #{rnn_forward.1}
  #allocation0 [shape = 'u32[]', space=smem, size = 0x4, offset = 0x4, fixed_abs, tag = 'smem constant byte address 0x4 - core index']
  #allocation1 [shape = 'u32[144,128]{1,0:T(1,128)}', space=vmem, size = 0x12000, scoped, tag = 'internal scratch']
  #allocation2 [shape = 'f32[64,512]{1,0:T(8,128)}', space=vmem, size = 0x20000, scoped, tag = 'scratch operand']
  #allocation3 [shape = 'f32[1,1]{1,0:T(1,128)S(1)}', space=vmem, size = 0x200, scoped, tag = 'scoped memory for rnn_forward.1']
  %s0 = inlined_call_operand.vmem [shape: s32[1,64,1], index: 0, kind: input, shape index: {}]
  %s1 = inlined_call_operand.vmem [shape: s32[1,8,1], index: 1, kind: input, shape index: {}]
  %s2 = inlined_call_operand.hbm [shape: f32[128,512], index: 2, kind: input, shape index: {}]
  %s3 = inlined_call_operand.hbm [shape: f32[128,512], index: 3, kind: input, shape index: {}]
  %s4 = inlined_call_operand.hbm [shape: f32[128,128], index: 4, kind: input, shape index: {}]
  %s5 = inlined_call_operand.vmem [shape: f32[1,128], index: 5, kind: input, shape index: {}]
  %s6 = inlined_call_operand.vmem [shape: f32[1,128], index: 6, kind: input, shape index: {}]
  %s7 = inlined_call_operand.<no memory space> [shape: f32[1,1], index: 7, kind: input, shape index: {}]
  %s8 = inlined_call_operand.vmem [shape: f32[8,1], index: 8, kind: output, shape index: {}]
  %s9 = sld [smem:[#allocation0]]
  $region54: #{rnn_forward.1} parent=0
    _
  %s11 = ssub.s32 1, %s9
  %s12 = scalar_select 0, %s11, %s9
  %v13 = vstv %s7
  %14 = vst [vmem:[#allocation3] sm:$0x1] %v13
  $region1: #{rnn_forward.1} parent=0
    #allocation4 [shape = 'u8[262144]{0}', space=vmem, size = 0x40000, scoped, tag = 'input window, operand 2, single buffered']
    #allocation5 [shape = 's32[1]{0}', space=sflag, size = 0x4, scoped, tag = 'scoped memory for rnn_forward.1']
    #allocation6 [shape = 'u8[262144]{0}', space=vmem, size = 0x40000, scoped, tag = 'input window, operand 3, single buffered']
    #allocation7 [shape = 's32[1]{0}', space=sflag, size = 0x4, scoped, tag = 'scoped memory for rnn_forward.1']
    #allocation8 [shape = 'u8[65536]{0}', space=vmem, size = 0x10000, scoped, tag = 'input window, operand 4, single buffered']
    %15 = vsyncpa [#allocation5], 0
    %16 = vsyncpa [#allocation7], 0
    // Predicated region
    $region2: #{rnn_forward.1} parent=1 // pred_check
      _
    $region3: #{rnn_forward.1} parent=1 // pred_check_branch
      %18 = sbr.rel (0) target = $region5
    $region4: #{rnn_forward.1} parent=1 // pred_region
      _
    $region5: #{rnn_forward.1} parent=1 // pred_fallthru
      _
    // Predicated region
    $region6: #{rnn_forward.1} parent=1 // pred_check
      _
    $region7: #{rnn_forward.1} parent=1 // pred_check_branch
      %20 = sbr.rel (0) target = $region9
    $region8: #{rnn_forward.1} parent=1 // pred_region
      _
    $region9: #{rnn_forward.1} parent=1 // pred_fallthru
      _
    // Predicated region
    $region10: #{rnn_forward.1} parent=1 // pred_check
      _
    $region11: #{rnn_forward.1} parent=1 // pred_check_branch
      %22 = sbr.rel (0) target = $region13
    $region12: #{rnn_forward.1} parent=1 // pred_region
      %s24 = ssub.s32 8192, 8192
      %25 = vsyncadd [#allocation5], %s24
      %s26 = sshll.u32 [#allocation4], 4
      %s27 = int_to_ptr.vmem [resolvable:$true] %s26
      %32 = dma.hbm_to_vmem [thread:$0]  %s2, 8192, %s27, [#allocation5], 512, 512, 32
    $region13: #{rnn_forward.1} parent=1 // pred_fallthru
      _
    // Predicated region
    $region14: #{rnn_forward.1} parent=1 // pred_check
      _
    $region15: #{rnn_forward.1} parent=1 // pred_check_branch
      %34 = sbr.rel (0) target = $region17
    $region16: #{rnn_forward.1} parent=1 // pred_region
      %s36 = ssub.s32 8192, 8192
      %37 = vsyncadd [#allocation7], %s36
      %s38 = sshll.u32 [#allocation6], 4
      %s39 = int_to_ptr.vmem [resolvable:$true] %s38
      %44 = dma.hbm_to_vmem [thread:$0]  %s3, 8192, %s39, [#allocation7], 512, 512, 32
    $region17: #{rnn_forward.1} parent=1 // pred_fallthru
      _
    // Predicated region
    $region18: #{rnn_forward.1} parent=1 // pred_check
      _
    $region19: #{rnn_forward.1} parent=1 // pred_check_branch
      %46 = sbr.rel (0) target = $region21
    $region20: #{rnn_forward.1} parent=1 // pred_region
      %s48 = ssub.s32 2048, 2048
      %49 = vsyncadd [#allocation7], %s48
      %s50 = sshll.u32 [#allocation8], 4
      %s51 = int_to_ptr.vmem [resolvable:$true] %s50
      %56 = dma.hbm_to_vmem [thread:$0]  %s4, 2048, %s51, [#allocation7], 128, 128, 8
    $region21: #{rnn_forward.1} parent=1 // pred_fallthru
      _
    // Predicated region
    $region22: #{rnn_forward.1} parent=1 // pred_check
      _
    $region23: #{rnn_forward.1} parent=1 // pred_check_branch
      %58 = sbr.rel (0) target = $region25
    $region24: #{rnn_forward.1} parent=1 // pred_region
      _
    $region25: #{rnn_forward.1} parent=1 // pred_fallthru
      _
    // Predicated region
    $region26: #{rnn_forward.1} parent=1 // pred_check
      _
    $region27: #{rnn_forward.1} parent=1 // pred_check_branch
      %60 = sbr.rel (0) target = $region29
    $region28: #{rnn_forward.1} parent=1 // pred_region
      _
    $region29: #{rnn_forward.1} parent=1 // pred_fallthru
      _
    // Predicated region
    $region30: #{rnn_forward.1} parent=1 // pred_check
      _
    $region31: #{rnn_forward.1} parent=1 // pred_check_branch
      %62 = sbr.rel (0) target = $region33
    $region32: #{rnn_forward.1} parent=1 // pred_region
      _
    $region33: #{rnn_forward.1} parent=1 // pred_fallthru
      _
    // Predicated region
    $region34: #{rnn_forward.1} parent=1 // pred_check
      _
    $region35: #{rnn_forward.1} parent=1 // pred_check_branch
      %64 = sbr.rel (0) target = $region37
    $region36: #{rnn_forward.1} parent=1 // pred_region
      %65 = dma.done [#allocation5], 8192
    $region37: #{rnn_forward.1} parent=1 // pred_fallthru
      _
    // Predicated region
    $region38: #{rnn_forward.1} parent=1 // pred_check
      _
    $region39: #{rnn_forward.1} parent=1 // pred_check_branch
      %67 = sbr.rel (0) target = $region41
    $region40: #{rnn_forward.1} parent=1 // pred_region
      %68 = dma.done [#allocation7], 8192
    $region41: #{rnn_forward.1} parent=1 // pred_fallthru
      _
    // Predicated region
    $region42: #{rnn_forward.1} parent=1 // pred_check
      _
    $region43: #{rnn_forward.1} parent=1 // pred_check_branch
      %70 = sbr.rel (0) target = $region45
    $region44: #{rnn_forward.1} parent=1 // pred_region
      %71 = dma.done [#allocation7], 2048
    $region45: #{rnn_forward.1} parent=1 // pred_fallthru
      _
    %v72 = vld [vmem:[%s0] sm:$0xff]
    %v73 = vld [vmem:[%s0 + $0x8] sm:$0xff]
    %v74 = vld [vmem:[%s0 + $0x10] sm:$0xff]
    %v75 = vld [vmem:[%s0 + $0x18] sm:$0xff]
    %v76 = vld [vmem:[%s0 + $0x20] sm:$0xff]
    %v77 = vld [vmem:[%s0 + $0x28] sm:$0xff]
    %v78 = vld [vmem:[%s0 + $0x30] sm:$0xff]
    %v79 = vld [vmem:[%s0 + $0x38] sm:$0xff]
    %v80 = vlaneseq
    %v81 = vand.u32 %v80, 127
    %82 = vset.pattern.permute.xlu0 0
    %83 = vperm.xlu0 %82, %v72
    %v84 = vpop.permute.xlu0 %83
    %85 = vset.pattern.permute.xlu0 0
    %86 = vperm.xlu0 %85, %v73
    %v87 = vpop.permute.xlu0 %86
    %88 = vset.pattern.permute.xlu0 0
    %89 = vperm.xlu0 %88, %v74
    %v90 = vpop.permute.xlu0 %89
    %91 = vset.pattern.permute.xlu0 0
    %92 = vperm.xlu0 %91, %v75
    %v93 = vpop.permute.xlu0 %92
    %94 = vset.pattern.permute.xlu0 0
    %95 = vperm.xlu0 %94, %v76
    %v96 = vpop.permute.xlu0 %95
    %97 = vset.pattern.permute.xlu0 0
    %98 = vperm.xlu0 %97, %v77
    %v99 = vpop.permute.xlu0 %98
    %100 = vset.pattern.permute.xlu0 0
    %101 = vperm.xlu0 %100, %v78
    %v102 = vpop.permute.xlu0 %101
    %103 = vset.pattern.permute.xlu0 0
    %104 = vperm.xlu0 %103, %v79
    %v105 = vpop.permute.xlu0 %104
    %vm106 = vcmp.eq.s32.totalorder %v81, %v84
    %vm107 = vcmp.eq.s32.totalorder %v81, %v87
    %vm108 = vcmp.eq.s32.totalorder %v81, %v90
    %vm109 = vcmp.eq.s32.totalorder %v81, %v93
    %vm110 = vcmp.eq.s32.totalorder %v81, %v96
    %vm111 = vcmp.eq.s32.totalorder %v81, %v99
    %vm112 = vcmp.eq.s32.totalorder %v81, %v102
    %vm113 = vcmp.eq.s32.totalorder %v81, %v105
    %v114 = vsel %vm106, 1, 0
    %v115 = vsel %vm107, 1, 0
    %v116 = vsel %vm108, 1, 0
    %v117 = vsel %vm109, 1, 0
    %v118 = vsel %vm110, 1, 0
    %v119 = vsel %vm111, 1, 0
    %v120 = vsel %vm112, 1, 0
    %v121 = vsel %vm113, 1, 0
    %v122 = vcvt.s32.f32 %v114
    %v123 = vcvt.s32.f32 %v115
    %v124 = vcvt.s32.f32 %v116
    %v125 = vcvt.s32.f32 %v117
    %v126 = vcvt.s32.f32 %v118
    %v127 = vcvt.s32.f32 %v119
    %v128 = vcvt.s32.f32 %v120
    %v129 = vcvt.s32.f32 %v121
    %v130 = vld [vmem:[#allocation4] sm:$0xff]
    %v131 = vld [vmem:[#allocation4 + $0x8] sm:$0xff]
    %v132 = vld [vmem:[#allocation4 + $0x10] sm:$0xff]
    %v133 = vld [vmem:[#allocation4 + $0x18] sm:$0xff]
    %v134 = vld [vmem:[#allocation4 + $0x20] sm:$0xff]
    %v135 = vld [vmem:[#allocation4 + $0x28] sm:$0xff]
    %v136 = vld [vmem:[#allocation4 + $0x30] sm:$0xff]
    %v137 = vld [vmem:[#allocation4 + $0x38] sm:$0xff]
    %v138 = vld [vmem:[#allocation4 + $0x40] sm:$0xff]
    %v139 = vld [vmem:[#allocation4 + $0x48] sm:$0xff]
    %v140 = vld [vmem:[#allocation4 + $0x50] sm:$0xff]
    %v141 = vld [vmem:[#allocation4 + $0x58] sm:$0xff]
    %v142 = vld [vmem:[#allocation4 + $0x60] sm:$0xff]
    %v143 = vld [vmem:[#allocation4 + $0x68] sm:$0xff]
    %v144 = vld [vmem:[#allocation4 + $0x70] sm:$0xff]
    %v145 = vld [vmem:[#allocation4 + $0x78] sm:$0xff]
    %v146 = vld [vmem:[#allocation4 + $0x80] sm:$0xff]
    %v147 = vld [vmem:[#allocation4 + $0x88] sm:$0xff]
    %v148 = vld [vmem:[#allocation4 + $0x90] sm:$0xff]
    %v149 = vld [vmem:[#allocation4 + $0x98] sm:$0xff]
    %v150 = vld [vmem:[#allocation4 + $0xa0] sm:$0xff]
    %v151 = vld [vmem:[#allocation4 + $0xa8] sm:$0xff]
    %v152 = vld [vmem:[#allocation4 + $0xb0] sm:$0xff]
    %v153 = vld [vmem:[#allocation4 + $0xb8] sm:$0xff]
    %v154 = vld [vmem:[#allocation4 + $0xc0] sm:$0xff]
    %v155 = vld [vmem:[#allocation4 + $0xc8] sm:$0xff]
    %v156 = vld [vmem:[#allocation4 + $0xd0] sm:$0xff]
    %v157 = vld [vmem:[#allocation4 + $0xd8] sm:$0xff]
    %v158 = vld [vmem:[#allocation4 + $0xe0] sm:$0xff]
    %v159 = vld [vmem:[#allocation4 + $0xe8] sm:$0xff]
    %v160 = vld [vmem:[#allocation4 + $0xf0] sm:$0xff]
    %v161 = vld [vmem:[#allocation4 + $0xf8] sm:$0xff]
    %v162 = vld [vmem:[#allocation4 + $0x100] sm:$0xff]
    %v163 = vld [vmem:[#allocation4 + $0x108] sm:$0xff]
    %v164 = vld [vmem:[#allocation4 + $0x110] sm:$0xff]
    %v165 = vld [vmem:[#allocation4 + $0x118] sm:$0xff]
    %v166 = vld [vmem:[#allocation4 + $0x120] sm:$0xff]
    %v167 = vld [vmem:[#allocation4 + $0x128] sm:$0xff]
    %v168 = vld [vmem:[#allocation4 + $0x130] sm:$0xff]
    %v169 = vld [vmem:[#allocation4 + $0x138] sm:$0xff]
    %v170 = vld [vmem:[#allocation4 + $0x140] sm:$0xff]
    %v171 = vld [vmem:[#allocation4 + $0x148] sm:$0xff]
    %v172 = vld [vmem:[#allocation4 + $0x150] sm:$0xff]
    %v173 = vld [vmem:[#allocation4 + $0x158] sm:$0xff]
    %v174 = vld [vmem:[#allocation4 + $0x160] sm:$0xff]
    %v175 = vld [vmem:[#allocation4 + $0x168] sm:$0xff]
    %v176 = vld [vmem:[#allocation4 + $0x170] sm:$0xff]
    %v177 = vld [vmem:[#allocation4 + $0x178] sm:$0xff]
    %v178 = vld [vmem:[#allocation4 + $0x180] sm:$0xff]
    %v179 = vld [vmem:[#allocation4 + $0x188] sm:$0xff]
    %v180 = vld [vmem:[#allocation4 + $0x190] sm:$0xff]
    %v181 = vld [vmem:[#allocation4 + $0x198] sm:$0xff]
    %v182 = vld [vmem:[#allocation4 + $0x1a0] sm:$0xff]
    %v183 = vld [vmem:[#allocation4 + $0x1a8] sm:$0xff]
    %v184 = vld [vmem:[#allocation4 + $0x1b0] sm:$0xff]
    %v185 = vld [vmem:[#allocation4 + $0x1b8] sm:$0xff]
    %v186 = vld [vmem:[#allocation4 + $0x1c0] sm:$0xff]
    %v187 = vld [vmem:[#allocation4 + $0x1c8] sm:$0xff]
    %v188 = vld [vmem:[#allocation4 + $0x1d0] sm:$0xff]
    %v189 = vld [vmem:[#allocation4 + $0x1d8] sm:$0xff]
    %v190 = vld [vmem:[#allocation4 + $0x1e0] sm:$0xff]
    %v191 = vld [vmem:[#allocation4 + $0x1e8] sm:$0xff]
    %v192 = vld [vmem:[#allocation4 + $0x1f0] sm:$0xff]
    %v193 = vld [vmem:[#allocation4 + $0x1f8] sm:$0xff]
    %194 = vmatprep.subr.mxu0 %v131
    %195 = vmatpush1.msra.mxu0 %v130
    %196 = vmatprep.subr.mxu0 %v135
    %197 = vmatpush1.msra.mxu0 %v134
    %198 = vmatprep.subr.mxu0 %v139
    %199 = vmatpush1.msra.mxu0 %v138
    %200 = vmatprep.subr.mxu0 %v143
    %201 = vmatpush1.msra.mxu0 %v142
    %202 = vmatprep.subr.mxu0 %v147
    %203 = vmatpush1.msra.mxu0 %v146
    %204 = vmatprep.subr.mxu0 %v151
    %205 = vmatpush1.msra.mxu0 %v150
    %206 = vmatprep.subr.mxu0 %v155
    %207 = vmatpush1.msra.mxu0 %v154
    %208 = vmatprep.subr.mxu0 %v159
    %209 = vmatpush1.msra.mxu0 %v158
    %210 = vmatprep.subr.mxu0 %v163
    %211 = vmatpush1.msra.mxu0 %v162
    %212 = vmatprep.subr.mxu0 %v167
    %213 = vmatpush1.msra.mxu0 %v166
    %214 = vmatprep.subr.mxu0 %v171
    %215 = vmatpush1.msra.mxu0 %v170
    %216 = vmatprep.subr.mxu0 %v175
    %217 = vmatpush1.msra.mxu0 %v174
    %218 = vmatprep.subr.mxu0 %v179
    %219 = vmatpush1.msra.mxu0 %v178
    %220 = vmatprep.subr.mxu0 %v183
    %221 = vmatpush1.msra.mxu0 %v182
    %222 = vmatprep.subr.mxu0 %v187
    %223 = vmatpush1.msra.mxu0 %v186
    %224 = vmatprep.subr.mxu0 %v191
    %225 = vmatpush1.msra.mxu0 %v190
    %226 = vmatprep.subr.mxu0 0.0
    %227 = vmatpush1.msra.mxu0 0.0
    %228 = vmatprep.subr.mxu0 0.0
    %229 = vmatpush1.msra.mxu0 0.0
    %230 = vmatprep.subr.mxu0 0.0
    %231 = vmatpush1.msra.mxu0 0.0
    %232 = vmatprep.subr.mxu0 0.0
    %233 = vmatpush1.msra.mxu0 0.0
    %234 = vmatprep.subr.mxu0 0.0
    %235 = vmatpush1.msra.mxu0 0.0
    %236 = vmatprep.subr.mxu0 0.0
    %237 = vmatpush1.msra.mxu0 0.0
    %238 = vmatprep.subr.mxu0 0.0
    %239 = vmatpush1.msra.mxu0 0.0
    %240 = vmatprep.subr.mxu0 0.0
    %241 = vmatpush1.msra.mxu0 0.0
    %242 = vmatprep.subr.mxu0 0.0
    %243 = vmatpush1.msra.mxu0 0.0
    %244 = vmatprep.subr.mxu0 0.0
    %245 = vmatpush1.msra.mxu0 0.0
    %246 = vmatprep.subr.mxu0 0.0
    %247 = vmatpush1.msra.mxu0 0.0
    %248 = vmatprep.subr.mxu0 0.0
    %249 = vmatpush1.msra.mxu0 0.0
    %250 = vmatprep.subr.mxu0 0.0
    %251 = vmatpush1.msra.mxu0 0.0
    %252 = vmatprep.subr.mxu0 0.0
    %253 = vmatpush1.msra.mxu0 0.0
    %254 = vmatprep.subr.mxu0 0.0
    %255 = vmatpush1.msra.mxu0 0.0
    %256 = vmatprep.subr.mxu0 0.0
    %257 = vmatpush1.msra.mxu0 0.0
    %258 = vmatprep.mubr.f32.mxu0 0.0
    %259 = vmatmul.mubr.f32.gmra.mrb[0].mxu0 %v122
    %v260 = vpop.f32.mrb[0].mxu0
    %v261 = vadd.f32 0.0, %v260
    %v262 = vpop.f32.mrb[0].mxu0
    %v263 = vadd.f32 0.0, %v262
    %264 = vmatprep.mubr.f32.mxu0 0.0
    %265 = vmatmul.mubr.f32.gmra.mrb[0].mxu0 %v123
    %v266 = vpop.f32.mrb[0].mxu0
    %v267 = vadd.f32 0.0, %v266
    %v268 = vpop.f32.mrb[0].mxu0
    %v269 = vadd.f32 0.0, %v268
    %270 = vmatprep.mubr.f32.mxu0 0.0
    %271 = vmatmul.mubr.f32.gmra.mrb[0].mxu0 %v124
    %v272 = vpop.f32.mrb[0].mxu0
    %v273 = vadd.f32 0.0, %v272
    %v274 = vpop.f32.mrb[0].mxu0
    %v275 = vadd.f32 0.0, %v274
    %276 = vmatprep.mubr.f32.mxu0 0.0
    %277 = vmatmul.mubr.f32.gmra.mrb[0].mxu0 %v125
    %v278 = vpop.f32.mrb[0].mxu0
    %v279 = vadd.f32 0.0, %v278
    %v280 = vpop.f32.mrb[0].mxu0
    %v281 = vadd.f32 0.0, %v280
    %282 = vmatprep.mubr.f32.mxu0 0.0
    %283 = vmatmul.mubr.f32.gmra.mrb[0].mxu0 %v126
    %v284 = vpop.f32.mrb[0].mxu0
    %v285 = vadd.f32 0.0, %v284
    %v286 = vpop.f32.mrb[0].mxu0
    %v287 = vadd.f32 0.0, %v286
    %288 = vmatprep.mubr.f32.mxu0 0.0
    %289 = vmatmul.mubr.f32.gmra.mrb[0].mxu0 %v127
    %v290 = vpop.f32.mrb[0].mxu0
    %v291 = vadd.f32 0.0, %v290
    %v292 = vpop.f32.mrb[0].mxu0
    %v293 = vadd.f32 0.0, %v292
    %294 = vmatprep.mubr.f32.mxu0 0.0
    %295 = vmatmul.mubr.f32.gmra.mrb[0].mxu0 %v128
    %v296 = vpop.f32.mrb[0].mxu0
    %v297 = vadd.f32 0.0, %v296
    %v298 = vpop.f32.mrb[0].mxu0
    %v299 = vadd.f32 0.0, %v298
    %300 = vmatprep.mubr.f32.mxu0 0.0
    %301 = vmatmul.mubr.f32.gmra.mrb[0].mxu0 %v129
    %v302 = vpop.f32.mrb[0].mxu0
    %v303 = vadd.f32 0.0, %v302
    %v304 = vpop.f32.mrb[0].mxu0
    %v305 = vadd.f32 0.0, %v304
    %306 = vdwg.mxu0
    %307 = vmatprep.subr.mxu0 %v133
    %308 = vmatpush1.msra.mxu0 %v132
    %309 = vmatprep.subr.mxu0 %v137
    %310 = vmatpush1.msra.mxu0 %v136
    %311 = vmatprep.subr.mxu0 %v141
    %312 = vmatpush1.msra.mxu0 %v140
    %313 = vmatprep.subr.mxu0 %v145
    %314 = vmatpush1.msra.mxu0 %v144
    %315 = vmatprep.subr.mxu0 %v149
    %316 = vmatpush1.msra.mxu0 %v148
    %317 = vmatprep.subr.mxu0 %v153
    %318 = vmatpush1.msra.mxu0 %v152
    %319 = vmatprep.subr.mxu0 %v157
    %320 = vmatpush1.msra.mxu0 %v156
    %321 = vmatprep.subr.mxu0 %v161
    %322 = vmatpush1.msra.mxu0 %v160
    %323 = vmatprep.subr.mxu0 %v165
    %324 = vmatpush1.msra.mxu0 %v164
    %325 = vmatprep.subr.mxu0 %v169
    %326 = vmatpush1.msra.mxu0 %v168
    %327 = vmatprep.subr.mxu0 %v173
    %328 = vmatpush1.msra.mxu0 %v172
    %329 = vmatprep.subr.mxu0 %v177
    %330 = vmatpush1.msra.mxu0 %v176
    %331 = vmatprep.subr.mxu0 %v181
    %332 = vmatpush1.msra.mxu0 %v180
    %333 = vmatprep.subr.mxu0 %v185
    %334 = vmatpush1.msra.mxu0 %v184
    %335 = vmatprep.subr.mxu0 %v189
    %336 = vmatpush1.msra.mxu0 %v188
    %337 = vmatprep.subr.mxu0 %v193
    %338 = vmatpush1.msra.mxu0 %v192
    %339 = vmatprep.subr.mxu0 0.0
    %340 = vmatpush1.msra.mxu0 0.0
    %341 = vmatprep.subr.mxu0 0.0
    %342 = vmatpush1.msra.mxu0 0.0
    %343 = vmatprep.subr.mxu0 0.0
    %344 = vmatpush1.msra.mxu0 0.0
    %345 = vmatprep.subr.mxu0 0.0
    %346 = vmatpush1.msra.mxu0 0.0
    %347 = vmatprep.subr.mxu0 0.0
    %348 = vmatpush1.msra.mxu0 0.0
    %349 = vmatprep.subr.mxu0 0.0
    %350 = vmatpush1.msra.mxu0 0.0
    %351 = vmatprep.subr.mxu0 0.0
    %352 = vmatpush1.msra.mxu0 0.0
    %353 = vmatprep.subr.mxu0 0.0
    %354 = vmatpush1.msra.mxu0 0.0
    %355 = vmatprep.subr.mxu0 0.0
    %356 = vmatpush1.msra.mxu0 0.0
    %357 = vmatprep.subr.mxu0 0.0
    %358 = vmatpush1.msra.mxu0 0.0
    %359 = vmatprep.subr.mxu0 0.0
    %360 = vmatpush1.msra.mxu0 0.0
    %361 = vmatprep.subr.mxu0 0.0
    %362 = vmatpush1.msra.mxu0 0.0
    %363 = vmatprep.subr.mxu0 0.0
    %364 = vmatpush1.msra.mxu0 0.0
    %365 = vmatprep.subr.mxu0 0.0
    %366 = vmatpush1.msra.mxu0 0.0
    %367 = vmatprep.subr.mxu0 0.0
    %368 = vmatpush1.msra.mxu0 0.0
    %369 = vmatprep.subr.mxu0 0.0
    %370 = vmatpush1.msra.mxu0 0.0
    %371 = vmatprep.mubr.f32.mxu0 0.0
    %372 = vmatmul.mubr.f32.gmra.mrb[0].mxu0 %v122
    %v373 = vpop.f32.mrb[0].mxu0
    %v374 = vadd.f32 0.0, %v373
    %v375 = vpop.f32.mrb[0].mxu0
    %v376 = vadd.f32 0.0, %v375
    %377 = vmatprep.mubr.f32.mxu0 0.0
    %378 = vmatmul.mubr.f32.gmra.mrb[0].mxu0 %v123
    %v379 = vpop.f32.mrb[0].mxu0
    %v380 = vadd.f32 0.0, %v379
    %v381 = vpop.f32.mrb[0].mxu0
    %v382 = vadd.f32 0.0, %v381
    %383 = vmatprep.mubr.f32.mxu0 0.0
    %384 = vmatmul.mubr.f32.gmra.mrb[0].mxu0 %v124
    %v385 = vpop.f32.mrb[0].mxu0
    %v386 = vadd.f32 0.0, %v385
    %v387 = vpop.f32.mrb[0].mxu0
    %v388 = vadd.f32 0.0, %v387
    %389 = vmatprep.mubr.f32.mxu0 0.0
    %390 = vmatmul.mubr.f32.gmra.mrb[0].mxu0 %v125
    %v391 = vpop.f32.mrb[0].mxu0
    %v392 = vadd.f32 0.0, %v391
    %v393 = vpop.f32.mrb[0].mxu0
    %v394 = vadd.f32 0.0, %v393
    %395 = vmatprep.mubr.f32.mxu0 0.0
    %396 = vmatmul.mubr.f32.gmra.mrb[0].mxu0 %v126
    %v397 = vpop.f32.mrb[0].mxu0
    %v398 = vadd.f32 0.0, %v397
    %v399 = vpop.f32.mrb[0].mxu0
    %v400 = vadd.f32 0.0, %v399
    %401 = vmatprep.mubr.f32.mxu0 0.0
    %402 = vmatmul.mubr.f32.gmra.mrb[0].mxu0 %v127
    %v403 = vpop.f32.mrb[0].mxu0
    %v404 = vadd.f32 0.0, %v403
    %v405 = vpop.f32.mrb[0].mxu0
    %v406 = vadd.f32 0.0, %v405
    %407 = vmatprep.mubr.f32.mxu0 0.0
    %408 = vmatmul.mubr.f32.gmra.mrb[0].mxu0 %v128
    %v409 = vpop.f32.mrb[0].mxu0
    %v410 = vadd.f32 0.0, %v409
    %v411 = vpop.f32.mrb[0].mxu0
    %v412 = vadd.f32 0.0, %v411
    %413 = vmatprep.mubr.f32.mxu0 0.0
    %414 = vmatmul.mubr.f32.gmra.mrb[0].mxu0 %v129
    %v415 = vpop.f32.mrb[0].mxu0
    %v416 = vadd.f32 0.0, %v415
    %v417 = vpop.f32.mrb[0].mxu0
    %v418 = vadd.f32 0.0, %v417
    %419 = vdwg.mxu0
    %420 = vst [vmem:[#allocation2] sm:$0xff] %v261
    %421 = vst [vmem:[#allocation2 + $0x8] sm:$0xff] %v263
    %422 = vst [vmem:[#allocation2 + $0x10] sm:$0xff] %v374
    %423 = vst [vmem:[#allocation2 + $0x18] sm:$0xff] %v376
    %424 = vst [vmem:[#allocation2 + $0x20] sm:$0xff] %v267
    %425 = vst [vmem:[#allocation2 + $0x28] sm:$0xff] %v269
    %426 = vst [vmem:[#allocation2 + $0x30] sm:$0xff] %v380
    %427 = vst [vmem:[#allocation2 + $0x38] sm:$0xff] %v382
    %428 = vst [vmem:[#allocation2 + $0x40] sm:$0xff] %v273
    %429 = vst [vmem:[#allocation2 + $0x48] sm:$0xff] %v275
    %430 = vst [vmem:[#allocation2 + $0x50] sm:$0xff] %v386
    %431 = vst [vmem:[#allocation2 + $0x58] sm:$0xff] %v388
    %432 = vst [vmem:[#allocation2 + $0x60] sm:$0xff] %v279
    %433 = vst [vmem:[#allocation2 + $0x68] sm:$0xff] %v281
    %434 = vst [vmem:[#allocation2 + $0x70] sm:$0xff] %v392
    %435 = vst [vmem:[#allocation2 + $0x78] sm:$0xff] %v394
    %436 = vst [vmem:[#allocation2 + $0x80] sm:$0xff] %v285
    %437 = vst [vmem:[#allocation2 + $0x88] sm:$0xff] %v287
    %438 = vst [vmem:[#allocation2 + $0x90] sm:$0xff] %v398
    %439 = vst [vmem:[#allocation2 + $0x98] sm:$0xff] %v400
    %440 = vst [vmem:[#allocation2 + $0xa0] sm:$0xff] %v291
    %441 = vst [vmem:[#allocation2 + $0xa8] sm:$0xff] %v293
    %442 = vst [vmem:[#allocation2 + $0xb0] sm:$0xff] %v404
    %443 = vst [vmem:[#allocation2 + $0xb8] sm:$0xff] %v406
    %444 = vst [vmem:[#allocation2 + $0xc0] sm:$0xff] %v297
    %445 = vst [vmem:[#allocation2 + $0xc8] sm:$0xff] %v299
    %446 = vst [vmem:[#allocation2 + $0xd0] sm:$0xff] %v410
    %447 = vst [vmem:[#allocation2 + $0xd8] sm:$0xff] %v412
    %448 = vst [vmem:[#allocation2 + $0xe0] sm:$0xff] %v303
    %449 = vst [vmem:[#allocation2 + $0xe8] sm:$0xff] %v305
    %450 = vst [vmem:[#allocation2 + $0xf0] sm:$0xff] %v416
    %451 = vst [vmem:[#allocation2 + $0xf8] sm:$0xff] %v418
    %v452 = vld [vmem:[%s1] sm:$0xff]
    %s453 = smul.u32 0, 4
    %s454 = smul.addr %s453, 8
    %s455 = scalar_lea.vmem [#allocation2], %s454
    %v456 = vld [vmem:[%s455] sm:$0xff]
    %v457 = vld [vmem:[%s455 + $0x8] sm:$0xff]
    %v458 = vld [vmem:[%s455 + $0x10] sm:$0xff]
    %v459 = vld [vmem:[%s455 + $0x18] sm:$0xff]
    %v460 = vld [vmem:[#allocation6] sm:$0xff]
    %v461 = vld [vmem:[#allocation6 + $0x8] sm:$0xff]
    %v462 = vld [vmem:[#allocation6 + $0x10] sm:$0xff]
    %v463 = vld [vmem:[#allocation6 + $0x18] sm:$0xff]
    %v464 = vld [vmem:[#allocation6 + $0x20] sm:$0xff]
    %v465 = vld [vmem:[#allocation6 + $0x28] sm:$0xff]
    %v466 = vld [vmem:[#allocation6 + $0x30] sm:$0xff]
    %v467 = vld [vmem:[#allocation6 + $0x38] sm:$0xff]
    %v468 = vld [vmem:[#allocation6 + $0x40] sm:$0xff]
    %v469 = vld [vmem:[#allocation6 + $0x48] sm:$0xff]
    %v470 = vld [vmem:[#allocation6 + $0x50] sm:$0xff]
    %v471 = vld [vmem:[#allocation6 + $0x58] sm:$0xff]
    %v472 = vld [vmem:[#allocation6 + $0x60] sm:$0xff]
    %v473 = vld [vmem:[#allocation6 + $0x68] sm:$0xff]
    %v474 = vld [vmem:[#allocation6 + $0x70] sm:$0xff]
    %v475 = vld [vmem:[#allocation6 + $0x78] sm:$0xff]
    %v476 = vld [vmem:[#allocation6 + $0x80] sm:$0xff]
    %v477 = vld [vmem:[#allocation6 + $0x88] sm:$0xff]
    %v478 = vld [vmem:[#allocation6 + $0x90] sm:$0xff]
    %v479 = vld [vmem:[#allocation6 + $0x98] sm:$0xff]
    %v480 = vld [vmem:[#allocation6 + $0xa0] sm:$0xff]
    %v481 = vld [vmem:[#allocation6 + $0xa8] sm:$0xff]
    %v482 = vld [vmem:[#allocation6 + $0xb0] sm:$0xff]
    %v483 = vld [vmem:[#allocation6 + $0xb8] sm:$0xff]
    %v484 = vld [vmem:[#allocation6 + $0xc0] sm:$0xff]
    %v485 = vld [vmem:[#allocation6 + $0xc8] sm:$0xff]
    %v486 = vld [vmem:[#allocation6 + $0xd0] sm:$0xff]
    %v487 = vld [vmem:[#allocation6 + $0xd8] sm:$0xff]
    %v488 = vld [vmem:[#allocation6 + $0xe0] sm:$0xff]
    %v489 = vld [vmem:[#allocation6 + $0xe8] sm:$0xff]
    %v490 = vld [vmem:[#allocation6 + $0xf0] sm:$0xff]
    %v491 = vld [vmem:[#allocation6 + $0xf8] sm:$0xff]
    %v492 = vld [vmem:[#allocation6 + $0x100] sm:$0xff]
    %v493 = vld [vmem:[#allocation6 + $0x108] sm:$0xff]
    %v494 = vld [vmem:[#allocation6 + $0x110] sm:$0xff]
    %v495 = vld [vmem:[#allocation6 + $0x118] sm:$0xff]
    %v496 = vld [vmem:[#allocation6 + $0x120] sm:$0xff]
    %v497 = vld [vmem:[#allocation6 + $0x128] sm:$0xff]
    %v498 = vld [vmem:[#allocation6 + $0x130] sm:$0xff]
    %v499 = vld [vmem:[#allocation6 + $0x138] sm:$0xff]
    %v500 = vld [vmem:[#allocation6 + $0x140] sm:$0xff]
    %v501 = vld [vmem:[#allocation6 + $0x148] sm:$0xff]
    %v502 = vld [vmem:[#allocation6 + $0x150] sm:$0xff]
    %v503 = vld [vmem:[#allocation6 + $0x158] sm:$0xff]
    %v504 = vld [vmem:[#allocation6 + $0x160] sm:$0xff]
    %v505 = vld [vmem:[#allocation6 + $0x168] sm:$0xff]
    %v506 = vld [vmem:[#allocation6 + $0x170] sm:$0xff]
    %v507 = vld [vmem:[#allocation6 + $0x178] sm:$0xff]
    %v508 = vld [vmem:[#allocation6 + $0x180] sm:$0xff]
    %v509 = vld [vmem:[#allocation6 + $0x188] sm:$0xff]
    %v510 = vld [vmem:[#allocation6 + $0x190] sm:$0xff]
    %v511 = vld [vmem:[#allocation6 + $0x198] sm:$0xff]
    %v512 = vld [vmem:[#allocation6 + $0x1a0] sm:$0xff]
    %v513 = vld [vmem:[#allocation6 + $0x1a8] sm:$0xff]
    %v514 = vld [vmem:[#allocation6 + $0x1b0] sm:$0xff]
    %v515 = vld [vmem:[#allocation6 + $0x1b8] sm:$0xff]
    %v516 = vld [vmem:[#allocation6 + $0x1c0] sm:$0xff]
    %v517 = vld [vmem:[#allocation6 + $0x1c8] sm:$0xff]
    %v518 = vld [vmem:[#allocation6 + $0x1d0] sm:$0xff]
    %v519 = vld [vmem:[#allocation6 + $0x1d8] sm:$0xff]
    %v520 = vld [vmem:[#allocation6 + $0x1e0] sm:$0xff]
    %v521 = vld [vmem:[#allocation6 + $0x1e8] sm:$0xff]
    %v522 = vld [vmem:[#allocation6 + $0x1f0] sm:$0xff]
    %v523 = vld [vmem:[#allocation6 + $0x1f8] sm:$0xff]
    %524 = vmatprep.subr.mxu0 %v461
    %525 = vmatpush1.msra.mxu0 %v460
    %526 = vmatprep.subr.mxu0 %v465
    %527 = vmatpush1.msra.mxu0 %v464
    %528 = vmatprep.subr.mxu0 %v469
    %529 = vmatpush1.msra.mxu0 %v468
    %530 = vmatprep.subr.mxu0 %v473
    %531 = vmatpush1.msra.mxu0 %v472
    %532 = vmatprep.subr.mxu0 %v477
    %533 = vmatpush1.msra.mxu0 %v476
    %534 = vmatprep.subr.mxu0 %v481
    %535 = vmatpush1.msra.mxu0 %v480
    %536 = vmatprep.subr.mxu0 %v485
    %537 = vmatpush1.msra.mxu0 %v484
    %538 = vmatprep.subr.mxu0 %v489
    %539 = vmatpush1.msra.mxu0 %v488
    %540 = vmatprep.subr.mxu0 %v493
    %541 = vmatpush1.msra.mxu0 %v492
    %542 = vmatprep.subr.mxu0 %v497
    %543 = vmatpush1.msra.mxu0 %v496
    %544 = vmatprep.subr.mxu0 %v501
    %545 = vmatpush1.msra.mxu0 %v500
    %546 = vmatprep.subr.mxu0 %v505
    %547 = vmatpush1.msra.mxu0 %v504
    %548 = vmatprep.subr.mxu0 %v509
    %549 = vmatpush1.msra.mxu0 %v508
    %550 = vmatprep.subr.mxu0 %v513
    %551 = vmatpush1.msra.mxu0 %v512
    %552 = vmatprep.subr.mxu0 %v517
    %553 = vmatpush1.msra.mxu0 %v516
    %554 = vmatprep.subr.mxu0 %v521
    %555 = vmatpush1.msra.mxu0 %v520
    %556 = vmatprep.subr.mxu0 0.0
    %557 = vmatpush1.msra.mxu0 0.0
    %558 = vmatprep.subr.mxu0 0.0
    %559 = vmatpush1.msra.mxu0 0.0
    %560 = vmatprep.subr.mxu0 0.0
    %561 = vmatpush1.msra.mxu0 0.0
    %562 = vmatprep.subr.mxu0 0.0
    %563 = vmatpush1.msra.mxu0 0.0
    %564 = vmatprep.subr.mxu0 0.0
    %565 = vmatpush1.msra.mxu0 0.0
    %566 = vmatprep.subr.mxu0 0.0
    %567 = vmatpush1.msra.mxu0 0.0
    %568 = vmatprep.subr.mxu0 0.0
    %569 = vmatpush1.msra.mxu0 0.0
    %570 = vmatprep.subr.mxu0 0.0
    %571 = vmatpush1.msra.mxu0 0.0
    %572 = vmatprep.subr.mxu0 0.0
    %573 = vmatpush1.msra.mxu0 0.0
    %574 = vmatprep.subr.mxu0 0.0
    %575 = vmatpush1.msra.mxu0 0.0
    %576 = vmatprep.subr.mxu0 0.0
    %577 = vmatpush1.msra.mxu0 0.0
    %578 = vmatprep.subr.mxu0 0.0
    %579 = vmatpush1.msra.mxu0 0.0
    %580 = vmatprep.subr.mxu0 0.0
    %581 = vmatpush1.msra.mxu0 0.0
    %582 = vmatprep.subr.mxu0 0.0
    %583 = vmatpush1.msra.mxu0 0.0
    %584 = vmatprep.subr.mxu0 0.0
    %585 = vmatpush1.msra.mxu0 0.0
    %586 = vmatprep.subr.mxu0 0.0
    %587 = vmatpush1.msra.mxu0 0.0
    %588 = vmatprep.mubr.f32.mxu0 0.0
    %589 = vmatmul.mubr.f32.gmra.mrb[0].mxu0 0.0
    %v590 = vpop.f32.mrb[0].mxu0
    %v591 = vadd.f32 0.0, %v590
    %v592 = vpop.f32.mrb[0].mxu0
    %v593 = vadd.f32 0.0, %v592
    %594 = vdwg.mxu0
    %595 = vmatprep.subr.mxu0 %v463
    %596 = vmatpush1.msra.mxu0 %v462
    %597 = vmatprep.subr.mxu0 %v467
    %598 = vmatpush1.msra.mxu0 %v466
    %599 = vmatprep.subr.mxu0 %v471
    %600 = vmatpush1.msra.mxu0 %v470
    %601 = vmatprep.subr.mxu0 %v475
    %602 = vmatpush1.msra.mxu0 %v474
    %603 = vmatprep.subr.mxu0 %v479
    %604 = vmatpush1.msra.mxu0 %v478
    %605 = vmatprep.subr.mxu0 %v483
    %606 = vmatpush1.msra.mxu0 %v482
    %607 = vmatprep.subr.mxu0 %v487
    %608 = vmatpush1.msra.mxu0 %v486
    %609 = vmatprep.subr.mxu0 %v491
    %610 = vmatpush1.msra.mxu0 %v490
    %611 = vmatprep.subr.mxu0 %v495
    %612 = vmatpush1.msra.mxu0 %v494
    %613 = vmatprep.subr.mxu0 %v499
    %614 = vmatpush1.msra.mxu0 %v498
    %615 = vmatprep.subr.mxu0 %v503
    %616 = vmatpush1.msra.mxu0 %v502
    %617 = vmatprep.subr.mxu0 %v507
    %618 = vmatpush1.msra.mxu0 %v506
    %619 = vmatprep.subr.mxu0 %v511
    %620 = vmatpush1.msra.mxu0 %v510
    %621 = vmatprep.subr.mxu0 %v515
    %622 = vmatpush1.msra.mxu0 %v514
    %623 = vmatprep.subr.mxu0 %v519
    %624 = vmatpush1.msra.mxu0 %v518
    %625 = vmatprep.subr.mxu0 %v523
    %626 = vmatpush1.msra.mxu0 %v522
    %627 = vmatprep.subr.mxu0 0.0
    %628 = vmatpush1.msra.mxu0 0.0
    %629 = vmatprep.subr.mxu0 0.0
    %630 = vmatpush1.msra.mxu0 0.0
    %631 = vmatprep.subr.mxu0 0.0
    %632 = vmatpush1.msra.mxu0 0.0
    %633 = vmatprep.subr.mxu0 0.0
    %634 = vmatpush1.msra.mxu0 0.0
    %635 = vmatprep.subr.mxu0 0.0
    %636 = vmatpush1.msra.mxu0 0.0
    %637 = vmatprep.subr.mxu0 0.0
    %638 = vmatpush1.msra.mxu0 0.0
    %639 = vmatprep.subr.mxu0 0.0
    %640 = vmatpush1.msra.mxu0 0.0
    %641 = vmatprep.subr.mxu0 0.0
    %642 = vmatpush1.msra.mxu0 0.0
    %643 = vmatprep.subr.mxu0 0.0
    %644 = vmatpush1.msra.mxu0 0.0
    %645 = vmatprep.subr.mxu0 0.0
    %646 = vmatpush1.msra.mxu0 0.0
    %647 = vmatprep.subr.mxu0 0.0
    %648 = vmatpush1.msra.mxu0 0.0
    %649 = vmatprep.subr.mxu0 0.0
    %650 = vmatpush1.msra.mxu0 0.0
    %651 = vmatprep.subr.mxu0 0.0
    %652 = vmatpush1.msra.mxu0 0.0
    %653 = vmatprep.subr.mxu0 0.0
    %654 = vmatpush1.msra.mxu0 0.0
    %655 = vmatprep.subr.mxu0 0.0
    %656 = vmatpush1.msra.mxu0 0.0
    %657 = vmatprep.subr.mxu0 0.0
    %658 = vmatpush1.msra.mxu0 0.0
    %659 = vmatprep.mubr.f32.mxu0 0.0
    %660 = vmatmul.mubr.f32.gmra.mrb[0].mxu0 0.0
    %v661 = vpop.f32.mrb[0].mxu0
    %v662 = vadd.f32 0.0, %v661
    %v663 = vpop.f32.mrb[0].mxu0
    %v664 = vadd.f32 0.0, %v663
    %665 = vdwg.mxu0
    %v666 = vadd.f32 %v456, %v591
    %v667 = vadd.f32 %v457, %v593
    %v668 = vadd.f32 %v458, %v662
    %v669 = vadd.f32 %v459, %v664
    %v670 = vmul.f32 %v666, 0.5
    %v671 = vmul.f32 %v667, 0.5
    %v672 = vtanh.pop %v670
    %v673 = vtanh.pop %v671
    %v674 = vadd.f32 %v672, 1.0
    %v675 = vadd.f32 %v673, 1.0
    %v676 = vmul.f32 %v674, 0.5
    %v677 = vmul.f32 %v675, 0.5
    %v678 = vtanh.pop %v668
    %v679 = vmul.f32 %v669, 0.5
    %v680 = vtanh.pop %v679
    %v681 = vadd.f32 %v680, 1.0
    %v682 = vmul.f32 %v681, 0.5
    %v683 = vmul.f32 %v677, 0.0
    %v684 = vmul.f32 %v676, %v678
    %v685 = vadd.f32 %v683, %v684
    %v686 = vtanh.pop %v685
    %v687 = vmul.f32 %v682, %v686
    %vm688 = vcmp.gt.s32.totalorder %v452, 0
    %v689 = vsel %vm688, 1, 0
    %690 = vset.pattern.permute.xlu0 0
    %691 = vperm.xlu0 %690, %v689
    %v692 = vpop.permute.xlu0 %691
    %vm693 = vcmp.eq.s32.totalorder %v692, 1
    %v694 = vsel %vm693, %v687, 0.0
    %v695 = vsel %vm693, %v685, 0.0
    %s696 = smul.u32 1, 4
    %s697 = smul.addr %s696, 8
    %s698 = scalar_lea.vmem [#allocation2], %s697
    %v699 = vld [vmem:[%s698] sm:$0xff]
    %v700 = vld [vmem:[%s698 + $0x8] sm:$0xff]
    %v701 = vld [vmem:[%s698 + $0x10] sm:$0xff]
    %v702 = vld [vmem:[%s698 + $0x18] sm:$0xff]
    %703 = vmatprep.subr.mxu0 %v461
    %704 = vmatpush1.msra.mxu0 %v460
    %705 = vmatprep.subr.mxu0 %v465
    %706 = vmatpush1.msra.mxu0 %v464
    %707 = vmatprep.subr.mxu0 %v469
    %708 = vmatpush1.msra.mxu0 %v468
    %709 = vmatprep.subr.mxu0 %v473
    %710 = vmatpush1.msra.mxu0 %v472
    %711 = vmatprep.subr.mxu0 %v477
    %712 = vmatpush1.msra.mxu0 %v476
    %713 = vmatprep.subr.mxu0 %v481
    %714 = vmatpush1.msra.mxu0 %v480
    %715 = vmatprep.subr.mxu0 %v485
    %716 = vmatpush1.msra.mxu0 %v484
    %717 = vmatprep.subr.mxu0 %v489
    %718 = vmatpush1.msra.mxu0 %v488
    %719 = vmatprep.subr.mxu0 %v493
    %720 = vmatpush1.msra.mxu0 %v492
    %721 = vmatprep.subr.mxu0 %v497
    %722 = vmatpush1.msra.mxu0 %v496
    %723 = vmatprep.subr.mxu0 %v501
    %724 = vmatpush1.msra.mxu0 %v500
    %725 = vmatprep.subr.mxu0 %v505
    %726 = vmatpush1.msra.mxu0 %v504
    %727 = vmatprep.subr.mxu0 %v509
    %728 = vmatpush1.msra.mxu0 %v508
    %729 = vmatprep.subr.mxu0 %v513
    %730 = vmatpush1.msra.mxu0 %v512
    %731 = vmatprep.subr.mxu0 %v517
    %732 = vmatpush1.msra.mxu0 %v516
    %733 = vmatprep.subr.mxu0 %v521
    %734 = vmatpush1.msra.mxu0 %v520
    %735 = vmatprep.subr.mxu0 0.0
    %736 = vmatpush1.msra.mxu0 0.0
    %737 = vmatprep.subr.mxu0 0.0
    %738 = vmatpush1.msra.mxu0 0.0
    %739 = vmatprep.subr.mxu0 0.0
    %740 = vmatpush1.msra.mxu0 0.0
    %741 = vmatprep.subr.mxu0 0.0
    %742 = vmatpush1.msra.mxu0 0.0
    %743 = vmatprep.subr.mxu0 0.0
    %744 = vmatpush1.msra.mxu0 0.0
    %745 = vmatprep.subr.mxu0 0.0
    %746 = vmatpush1.msra.mxu0 0.0
    %747 = vmatprep.subr.mxu0 0.0
    %748 = vmatpush1.msra.mxu0 0.0
    %749 = vmatprep.subr.mxu0 0.0
    %750 = vmatpush1.msra.mxu0 0.0
    %751 = vmatprep.subr.mxu0 0.0
    %752 = vmatpush1.msra.mxu0 0.0
    %753 = vmatprep.subr.mxu0 0.0
    %754 = vmatpush1.msra.mxu0 0.0
    %755 = vmatprep.subr.mxu0 0.0
    %756 = vmatpush1.msra.mxu0 0.0
    %757 = vmatprep.subr.mxu0 0.0
    %758 = vmatpush1.msra.mxu0 0.0
    %759 = vmatprep.subr.mxu0 0.0
    %760 = vmatpush1.msra.mxu0 0.0
    %761 = vmatprep.subr.mxu0 0.0
    %762 = vmatpush1.msra.mxu0 0.0
    %763 = vmatprep.subr.mxu0 0.0
    %764 = vmatpush1.msra.mxu0 0.0
    %765 = vmatprep.subr.mxu0 0.0
    %766 = vmatpush1.msra.mxu0 0.0
    %767 = vmatprep.mubr.f32.mxu0 0.0
    %768 = vmatmul.mubr.f32.gmra.mrb[0].mxu0 %v694
    %v769 = vpop.f32.mrb[0].mxu0
    %v770 = vadd.f32 0.0, %v769
    %v771 = vpop.f32.mrb[0].mxu0
    %v772 = vadd.f32 0.0, %v771
    %773 = vdwg.mxu0
    %774 = vmatprep.subr.mxu0 %v463
    %775 = vmatpush1.msra.mxu0 %v462
    %776 = vmatprep.subr.mxu0 %v467
    %777 = vmatpush1.msra.mxu0 %v466
    %778 = vmatprep.subr.mxu0 %v471
    %779 = vmatpush1.msra.mxu0 %v470
    %780 = vmatprep.subr.mxu0 %v475
    %781 = vmatpush1.msra.mxu0 %v474
    %782 = vmatprep.subr.mxu0 %v479
    %783 = vmatpush1.msra.mxu0 %v478
    %784 = vmatprep.subr.mxu0 %v483
    %785 = vmatpush1.msra.mxu0 %v482
    %786 = vmatprep.subr.mxu0 %v487
    %787 = vmatpush1.msra.mxu0 %v486
    %788 = vmatprep.subr.mxu0 %v491
    %789 = vmatpush1.msra.mxu0 %v490
    %790 = vmatprep.subr.mxu0 %v495
    %791 = vmatpush1.msra.mxu0 %v494
    %792 = vmatprep.subr.mxu0 %v499
    %793 = vmatpush1.msra.mxu0 %v498
    %794 = vmatprep.subr.mxu0 %v503
    %795 = vmatpush1.msra.mxu0 %v502
    %796 = vmatprep.subr.mxu0 %v507
    %797 = vmatpush1.msra.mxu0 %v506
    %798 = vmatprep.subr.mxu0 %v511
    %799 = vmatpush1.msra.mxu0 %v510
    %800 = vmatprep.subr.mxu0 %v515
    %801 = vmatpush1.msra.mxu0 %v514
    %802 = vmatprep.subr.mxu0 %v519
    %803 = vmatpush1.msra.mxu0 %v518
    %804 = vmatprep.subr.mxu0 %v523
    %805 = vmatpush1.msra.mxu0 %v522
    %806 = vmatprep.subr.mxu0 0.0
    %807 = vmatpush1.msra.mxu0 0.0
    %808 = vmatprep.subr.mxu0 0.0
    %809 = vmatpush1.msra.mxu0 0.0
    %810 = vmatprep.subr.mxu0 0.0
    %811 = vmatpush1.msra.mxu0 0.0
    %812 = vmatprep.subr.mxu0 0.0
    %813 = vmatpush1.msra.mxu0 0.0
    %814 = vmatprep.subr.mxu0 0.0
    %815 = vmatpush1.msra.mxu0 0.0
    %816 = vmatprep.subr.mxu0 0.0
    %817 = vmatpush1.msra.mxu0 0.0
    %818 = vmatprep.subr.mxu0 0.0
    %819 = vmatpush1.msra.mxu0 0.0
    %820 = vmatprep.subr.mxu0 0.0
    %821 = vmatpush1.msra.mxu0 0.0
    %822 = vmatprep.subr.mxu0 0.0
    %823 = vmatpush1.msra.mxu0 0.0
    %824 = vmatprep.subr.mxu0 0.0
    %825 = vmatpush1.msra.mxu0 0.0
    %826 = vmatprep.subr.mxu0 0.0
    %827 = vmatpush1.msra.mxu0 0.0
    %828 = vmatprep.subr.mxu0 0.0
    %829 = vmatpush1.msra.mxu0 0.0
    %830 = vmatprep.subr.mxu0 0.0
    %831 = vmatpush1.msra.mxu0 0.0
    %832 = vmatprep.subr.mxu0 0.0
    %833 = vmatpush1.msra.mxu0 0.0
    %834 = vmatprep.subr.mxu0 0.0
    %835 = vmatpush1.msra.mxu0 0.0
    %836 = vmatprep.subr.mxu0 0.0
    %837 = vmatpush1.msra.mxu0 0.0
    %838 = vmatprep.mubr.f32.mxu0 0.0
    %839 = vmatmul.mubr.f32.gmra.mrb[0].mxu0 %v694
    %v840 = vpop.f32.mrb[0].mxu0
    %v841 = vadd.f32 0.0, %v840
    %v842 = vpop.f32.mrb[0].mxu0
    %v843 = vadd.f32 0.0, %v842
    %844 = vdwg.mxu0
    %v845 = vadd.f32 %v699, %v770
    %v846 = vadd.f32 %v700, %v772
    %v847 = vadd.f32 %v701, %v841
    %v848 = vadd.f32 %v702, %v843
    %v849 = vmul.f32 %v845, 0.5
    %v850 = vmul.f32 %v846, 0.5
    %v851 = vtanh.pop %v849
    %v852 = vtanh.pop %v850
    %v853 = vadd.f32 %v851, 1.0
    %v854 = vadd.f32 %v852, 1.0
    %v855 = vmul.f32 %v853, 0.5
    %v856 = vmul.f32 %v854, 0.5
    %v857 = vtanh.pop %v847
    %v858 = vmul.f32 %v848, 0.5
    %v859 = vtanh.pop %v858
    %v860 = vadd.f32 %v859, 1.0
    %v861 = vmul.f32 %v860, 0.5
    %v862 = vmul.f32 %v856, %v695
    %v863 = vmul.f32 %v855, %v857
    %v864 = vadd.f32 %v862, %v863
    %v865 = vtanh.pop %v864
    %v866 = vmul.f32 %v861, %v865
    %vm867 = vcmp.gt.s32.totalorder %v452, 1
    %v868 = vsel %vm867, 1, 0
    %869 = vset.pattern.permute.xlu0 0
    %870 = vperm.xlu0 %869, %v868
    %v871 = vpop.permute.xlu0 %870
    %vm872 = vcmp.eq.s32.totalorder %v871, 1
    %v873 = vsel %vm872, %v866, %v694
    %v874 = vsel %vm872, %v864, %v695
    %s875 = smul.u32 2, 4
    %s876 = smul.addr %s875, 8
    %s877 = scalar_lea.vmem [#allocation2], %s876
    %v878 = vld [vmem:[%s877] sm:$0xff]
    %v879 = vld [vmem:[%s877 + $0x8] sm:$0xff]
    %v880 = vld [vmem:[%s877 + $0x10] sm:$0xff]
    %v881 = vld [vmem:[%s877 + $0x18] sm:$0xff]
    %882 = vmatprep.subr.mxu0 %v461
    %883 = vmatpush1.msra.mxu0 %v460
    %884 = vmatprep.subr.mxu0 %v465
    %885 = vmatpush1.msra.mxu0 %v464
    %886 = vmatprep.subr.mxu0 %v469
    %887 = vmatpush1.msra.mxu0 %v468
    %888 = vmatprep.subr.mxu0 %v473
    %889 = vmatpush1.msra.mxu0 %v472
    %890 = vmatprep.subr.mxu0 %v477
    %891 = vmatpush1.msra.mxu0 %v476
    %892 = vmatprep.subr.mxu0 %v481
    %893 = vmatpush1.msra.mxu0 %v480
    %894 = vmatprep.subr.mxu0 %v485
    %895 = vmatpush1.msra.mxu0 %v484
    %896 = vmatprep.subr.mxu0 %v489
    %897 = vmatpush1.msra.mxu0 %v488
    %898 = vmatprep.subr.mxu0 %v493
    %899 = vmatpush1.msra.mxu0 %v492
    %900 = vmatprep.subr.mxu0 %v497
    %901 = vmatpush1.msra.mxu0 %v496
    %902 = vmatprep.subr.mxu0 %v501
    %903 = vmatpush1.msra.mxu0 %v500
    %904 = vmatprep.subr.mxu0 %v505
    %905 = vmatpush1.msra.mxu0 %v504
    %906 = vmatprep.subr.mxu0 %v509
    %907 = vmatpush1.msra.mxu0 %v508
    %908 = vmatprep.subr.mxu0 %v513
    %909 = vmatpush1.msra.mxu0 %v512
    %910 = vmatprep.subr.mxu0 %v517
    %911 = vmatpush1.msra.mxu0 %v516
    %912 = vmatprep.subr.mxu0 %v521
    %913 = vmatpush1.msra.mxu0 %v520
    %914 = vmatprep.subr.mxu0 0.0
    %915 = vmatpush1.msra.mxu0 0.0
    %916 = vmatprep.subr.mxu0 0.0
    %917 = vmatpush1.msra.mxu0 0.0
    %918 = vmatprep.subr.mxu0 0.0
    %919 = vmatpush1.msra.mxu0 0.0
    %920 = vmatprep.subr.mxu0 0.0
    %921 = vmatpush1.msra.mxu0 0.0
    %922 = vmatprep.subr.mxu0 0.0
    %923 = vmatpush1.msra.mxu0 0.0
    %924 = vmatprep.subr.mxu0 0.0
    %925 = vmatpush1.msra.mxu0 0.0
    %926 = vmatprep.subr.mxu0 0.0
    %927 = vmatpush1.msra.mxu0 0.0
    %928 = vmatprep.subr.mxu0 0.0
    %929 = vmatpush1.msra.mxu0 0.0
    %930 = vmatprep.subr.mxu0 0.0
    %931 = vmatpush1.msra.mxu0 0.0
    %932 = vmatprep.subr.mxu0 0.0
    %933 = vmatpush1.msra.mxu0 0.0
    %934 = vmatprep.subr.mxu0 0.0
    %935 = vmatpush1.msra.mxu0 0.0
    %936 = vmatprep.subr.mxu0 0.0
    %937 = vmatpush1.msra.mxu0 0.0
    %938 = vmatprep.subr.mxu0 0.0
    %939 = vmatpush1.msra.mxu0 0.0
    %940 = vmatprep.subr.mxu0 0.0
    %941 = vmatpush1.msra.mxu0 0.0
    %942 = vmatprep.subr.mxu0 0.0
    %943 = vmatpush1.msra.mxu0 0.0
    %944 = vmatprep.subr.mxu0 0.0
    %945 = vmatpush1.msra.mxu0 0.0
    %946 = vmatprep.mubr.f32.mxu0 0.0
    %947 = vmatmul.mubr.f32.gmra.mrb[0].mxu0 %v873
    %v948 = vpop.f32.mrb[0].mxu0
    %v949 = vadd.f32 0.0, %v948
    %v950 = vpop.f32.mrb[0].mxu0
    %v951 = vadd.f32 0.0, %v950
    %952 = vdwg.mxu0
    %953 = vmatprep.subr.mxu0 %v463
    %954 = vmatpush1.msra.mxu0 %v462
    %955 = vmatprep.subr.mxu0 %v467
    %956 = vmatpush1.msra.mxu0 %v466
    %957 = vmatprep.subr.mxu0 %v471
    %958 = vmatpush1.msra.mxu0 %v470
    %959 = vmatprep.subr.mxu0 %v475
    %960 = vmatpush1.msra.mxu0 %v474
    %961 = vmatprep.subr.mxu0 %v479
    %962 = vmatpush1.msra.mxu0 %v478
    %963 = vmatprep.subr.mxu0 %v483
    %964 = vmatpush1.msra.mxu0 %v482
    %965 = vmatprep.subr.mxu0 %v487
    %966 = vmatpush1.msra.mxu0 %v486
    %967 = vmatprep.subr.mxu0 %v491
    %968 = vmatpush1.msra.mxu0 %v490
    %969 = vmatprep.subr.mxu0 %v495
    %970 = vmatpush1.msra.mxu0 %v494
    %971 = vmatprep.subr.mxu0 %v499
    %972 = vmatpush1.msra.mxu0 %v498
    %973 = vmatprep.subr.mxu0 %v503
    %974 = vmatpush1.msra.mxu0 %v502
    %975 = vmatprep.subr.mxu0 %v507
    %976 = vmatpush1.msra.mxu0 %v506
    %977 = vmatprep.subr.mxu0 %v511
    %978 = vmatpush1.msra.mxu0 %v510
    %979 = vmatprep.subr.mxu0 %v515
    %980 = vmatpush1.msra.mxu0 %v514
    %981 = vmatprep.subr.mxu0 %v519
    %982 = vmatpush1.msra.mxu0 %v518
    %983 = vmatprep.subr.mxu0 %v523
    %984 = vmatpush1.msra.mxu0 %v522
    %985 = vmatprep.subr.mxu0 0.0
    %986 = vmatpush1.msra.mxu0 0.0
    %987 = vmatprep.subr.mxu0 0.0
    %988 = vmatpush1.msra.mxu0 0.0
    %989 = vmatprep.subr.mxu0 0.0
    %990 = vmatpush1.msra.mxu0 0.0
    %991 = vmatprep.subr.mxu0 0.0
    %992 = vmatpush1.msra.mxu0 0.0
    %993 = vmatprep.subr.mxu0 0.0
    %994 = vmatpush1.msra.mxu0 0.0
    %995 = vmatprep.subr.mxu0 0.0
    %996 = vmatpush1.msra.mxu0 0.0
    %997 = vmatprep.subr.mxu0 0.0
    %998 = vmatpush1.msra.mxu0 0.0
    %999 = vmatprep.subr.mxu0 0.0
    %1000 = vmatpush1.msra.mxu0 0.0
    %1001 = vmatprep.subr.mxu0 0.0
    %1002 = vmatpush1.msra.mxu0 0.0
    %1003 = vmatprep.subr.mxu0 0.0
    %1004 = vmatpush1.msra.mxu0 0.0
    %1005 = vmatprep.subr.mxu0 0.0
    %1006 = vmatpush1.msra.mxu0 0.0
    %1007 = vmatprep.subr.mxu0 0.0
    %1008 = vmatpush1.msra.mxu0 0.0
    %1009 = vmatprep.subr.mxu0 0.0
    %1010 = vmatpush1.msra.mxu0 0.0
    %1011 = vmatprep.subr.mxu0 0.0
    %1012 = vmatpush1.msra.mxu0 0.0
    %1013 = vmatprep.subr.mxu0 0.0
    %1014 = vmatpush1.msra.mxu0 0.0
    %1015 = vmatprep.subr.mxu0 0.0
    %1016 = vmatpush1.msra.mxu0 0.0
    %1017 = vmatprep.mubr.f32.mxu0 0.0
    %1018 = vmatmul.mubr.f32.gmra.mrb[0].mxu0 %v873
    %v1019 = vpop.f32.mrb[0].mxu0
    %v1020 = vadd.f32 0.0, %v1019
    %v1021 = vpop.f32.mrb[0].mxu0
    %v1022 = vadd.f32 0.0, %v1021
    %1023 = vdwg.mxu0
    %v1024 = vadd.f32 %v878, %v949
    %v1025 = vadd.f32 %v879, %v951
    %v1026 = vadd.f32 %v880, %v1020
    %v1027 = vadd.f32 %v881, %v1022
    %v1028 = vmul.f32 %v1024, 0.5
    %v1029 = vmul.f32 %v1025, 0.5
    %v1030 = vtanh.pop %v1028
    %v1031 = vtanh.pop %v1029
    %v1032 = vadd.f32 %v1030, 1.0
    %v1033 = vadd.f32 %v1031, 1.0
    %v1034 = vmul.f32 %v1032, 0.5
    %v1035 = vmul.f32 %v1033, 0.5
    %v1036 = vtanh.pop %v1026
    %v1037 = vmul.f32 %v1027, 0.5
    %v1038 = vtanh.pop %v1037
    %v1039 = vadd.f32 %v1038, 1.0
    %v1040 = vmul.f32 %v1039, 0.5
    %v1041 = vmul.f32 %v1035, %v874
    %v1042 = vmul.f32 %v1034, %v1036
    %v1043 = vadd.f32 %v1041, %v1042
    %v1044 = vtanh.pop %v1043
    %v1045 = vmul.f32 %v1040, %v1044
    %vm1046 = vcmp.gt.s32.totalorder %v452, 2
    %v1047 = vsel %vm1046, 1, 0
    %1048 = vset.pattern.permute.xlu0 0
    %1049 = vperm.xlu0 %1048, %v1047
    %v1050 = vpop.permute.xlu0 %1049
    %vm1051 = vcmp.eq.s32.totalorder %v1050, 1
    %v1052 = vsel %vm1051, %v1045, %v873
    %v1053 = vsel %vm1051, %v1043, %v874
    %s1054 = smul.u32 3, 4
    %s1055 = smul.addr %s1054, 8
    %s1056 = scalar_lea.vmem [#allocation2], %s1055
    %v1057 = vld [vmem:[%s1056] sm:$0xff]
    %v1058 = vld [vmem:[%s1056 + $0x8] sm:$0xff]
    %v1059 = vld [vmem:[%s1056 + $0x10] sm:$0xff]
    %v1060 = vld [vmem:[%s1056 + $0x18] sm:$0xff]
    %1061 = vmatprep.subr.mxu0 %v461
    %1062 = vmatpush1.msra.mxu0 %v460
    %1063 = vmatprep.subr.mxu0 %v465
    %1064 = vmatpush1.msra.mxu0 %v464
    %1065 = vmatprep.subr.mxu0 %v469
    %1066 = vmatpush1.msra.mxu0 %v468
    %1067 = vmatprep.subr.mxu0 %v473
    %1068 = vmatpush1.msra.mxu0 %v472
    %1069 = vmatprep.subr.mxu0 %v477
    %1070 = vmatpush1.msra.mxu0 %v476
    %1071 = vmatprep.subr.mxu0 %v481
    %1072 = vmatpush1.msra.mxu0 %v480
    %1073 = vmatprep.subr.mxu0 %v485
    %1074 = vmatpush1.msra.mxu0 %v484
    %1075 = vmatprep.subr.mxu0 %v489
    %1076 = vmatpush1.msra.mxu0 %v488
    %1077 = vmatprep.subr.mxu0 %v493
    %1078 = vmatpush1.msra.mxu0 %v492
    %1079 = vmatprep.subr.mxu0 %v497
    %1080 = vmatpush1.msra.mxu0 %v496
    %1081 = vmatprep.subr.mxu0 %v501
    %1082 = vmatpush1.msra.mxu0 %v500
    %1083 = vmatprep.subr.mxu0 %v505
    %1084 = vmatpush1.msra.mxu0 %v504
    %1085 = vmatprep.subr.mxu0 %v509
    %1086 = vmatpush1.msra.mxu0 %v508
    %1087 = vmatprep.subr.mxu0 %v513
    %1088 = vmatpush1.msra.mxu0 %v512
    %1089 = vmatprep.subr.mxu0 %v517
    %1090 = vmatpush1.msra.mxu0 %v516
    %1091 = vmatprep.subr.mxu0 %v521
    %1092 = vmatpush1.msra.mxu0 %v520
    %1093 = vmatprep.subr.mxu0 0.0
    %1094 = vmatpush1.msra.mxu0 0.0
    %1095 = vmatprep.subr.mxu0 0.0
    %1096 = vmatpush1.msra.mxu0 0.0
    %1097 = vmatprep.subr.mxu0 0.0
    %1098 = vmatpush1.msra.mxu0 0.0
    %1099 = vmatprep.subr.mxu0 0.0
    %1100 = vmatpush1.msra.mxu0 0.0
    %1101 = vmatprep.subr.mxu0 0.0
    %1102 = vmatpush1.msra.mxu0 0.0
    %1103 = vmatprep.subr.mxu0 0.0
    %1104 = vmatpush1.msra.mxu0 0.0
    %1105 = vmatprep.subr.mxu0 0.0
    %1106 = vmatpush1.msra.mxu0 0.0
    %1107 = vmatprep.subr.mxu0 0.0
    %1108 = vmatpush1.msra.mxu0 0.0
    %1109 = vmatprep.subr.mxu0 0.0
    %1110 = vmatpush1.msra.mxu0 0.0
    %1111 = vmatprep.subr.mxu0 0.0
    %1112 = vmatpush1.msra.mxu0 0.0
    %1113 = vmatprep.subr.mxu0 0.0
    %1114 = vmatpush1.msra.mxu0 0.0
    %1115 = vmatprep.subr.mxu0 0.0
    %1116 = vmatpush1.msra.mxu0 0.0
    %1117 = vmatprep.subr.mxu0 0.0
    %1118 = vmatpush1.msra.mxu0 0.0
    %1119 = vmatprep.subr.mxu0 0.0
    %1120 = vmatpush1.msra.mxu0 0.0
    %1121 = vmatprep.subr.mxu0 0.0
    %1122 = vmatpush1.msra.mxu0 0.0
    %1123 = vmatprep.subr.mxu0 0.0
    %1124 = vmatpush1.msra.mxu0 0.0
    %1125 = vmatprep.mubr.f32.mxu0 0.0
    %1126 = vmatmul.mubr.f32.gmra.mrb[0].mxu0 %v1052
    %v1127 = vpop.f32.mrb[0].mxu0
    %v1128 = vadd.f32 0.0, %v1127
    %v1129 = vpop.f32.mrb[0].mxu0
    %v1130 = vadd.f32 0.0, %v1129
    %1131 = vdwg.mxu0
    %1132 = vmatprep.subr.mxu0 %v463
    %1133 = vmatpush1.msra.mxu0 %v462
    %1134 = vmatprep.subr.mxu0 %v467
    %1135 = vmatpush1.msra.mxu0 %v466
    %1136 = vmatprep.subr.mxu0 %v471
    %1137 = vmatpush1.msra.mxu0 %v470
    %1138 = vmatprep.subr.mxu0 %v475
    %1139 = vmatpush1.msra.mxu0 %v474
    %1140 = vmatprep.subr.mxu0 %v479
    %1141 = vmatpush1.msra.mxu0 %v478
    %1142 = vmatprep.subr.mxu0 %v483
    %1143 = vmatpush1.msra.mxu0 %v482
    %1144 = vmatprep.subr.mxu0 %v487
    %1145 = vmatpush1.msra.mxu0 %v486
    %1146 = vmatprep.subr.mxu0 %v491
    %1147 = vmatpush1.msra.mxu0 %v490
    %1148 = vmatprep.subr.mxu0 %v495
    %1149 = vmatpush1.msra.mxu0 %v494
    %1150 = vmatprep.subr.mxu0 %v499
    %1151 = vmatpush1.msra.mxu0 %v498
    %1152 = vmatprep.subr.mxu0 %v503
    %1153 = vmatpush1.msra.mxu0 %v502
    %1154 = vmatprep.subr.mxu0 %v507
    %1155 = vmatpush1.msra.mxu0 %v506
    %1156 = vmatprep.subr.mxu0 %v511
    %1157 = vmatpush1.msra.mxu0 %v510
    %1158 = vmatprep.subr.mxu0 %v515
    %1159 = vmatpush1.msra.mxu0 %v514
    %1160 = vmatprep.subr.mxu0 %v519
    %1161 = vmatpush1.msra.mxu0 %v518
    %1162 = vmatprep.subr.mxu0 %v523
    %1163 = vmatpush1.msra.mxu0 %v522
    %1164 = vmatprep.subr.mxu0 0.0
    %1165 = vmatpush1.msra.mxu0 0.0
    %1166 = vmatprep.subr.mxu0 0.0
    %1167 = vmatpush1.msra.mxu0 0.0
    %1168 = vmatprep.subr.mxu0 0.0
    %1169 = vmatpush1.msra.mxu0 0.0
    %1170 = vmatprep.subr.mxu0 0.0
    %1171 = vmatpush1.msra.mxu0 0.0
    %1172 = vmatprep.subr.mxu0 0.0
    %1173 = vmatpush1.msra.mxu0 0.0
    %1174 = vmatprep.subr.mxu0 0.0
    %1175 = vmatpush1.msra.mxu0 0.0
    %1176 = vmatprep.subr.mxu0 0.0
    %1177 = vmatpush1.msra.mxu0 0.0
    %1178 = vmatprep.subr.mxu0 0.0
    %1179 = vmatpush1.msra.mxu0 0.0
    %1180 = vmatprep.subr.mxu0 0.0
    %1181 = vmatpush1.msra.mxu0 0.0
    %1182 = vmatprep.subr.mxu0 0.0
    %1183 = vmatpush1.msra.mxu0 0.0
    %1184 = vmatprep.subr.mxu0 0.0
    %1185 = vmatpush1.msra.mxu0 0.0
    %1186 = vmatprep.subr.mxu0 0.0
    %1187 = vmatpush1.msra.mxu0 0.0
    %1188 = vmatprep.subr.mxu0 0.0
    %1189 = vmatpush1.msra.mxu0 0.0
    %1190 = vmatprep.subr.mxu0 0.0
    %1191 = vmatpush1.msra.mxu0 0.0
    %1192 = vmatprep.subr.mxu0 0.0
    %1193 = vmatpush1.msra.mxu0 0.0
    %1194 = vmatprep.subr.mxu0 0.0
    %1195 = vmatpush1.msra.mxu0 0.0
    %1196 = vmatprep.mubr.f32.mxu0 0.0
    %1197 = vmatmul.mubr.f32.gmra.mrb[0].mxu0 %v1052
    %v1198 = vpop.f32.mrb[0].mxu0
    %v1199 = vadd.f32 0.0, %v1198
    %v1200 = vpop.f32.mrb[0].mxu0
    %v1201 = vadd.f32 0.0, %v1200
    %1202 = vdwg.mxu0
    %v1203 = vadd.f32 %v1057, %v1128
    %v1204 = vadd.f32 %v1058, %v1130
    %v1205 = vadd.f32 %v1059, %v1199
    %v1206 = vadd.f32 %v1060, %v1201
    %v1207 = vmul.f32 %v1203, 0.5
    %v1208 = vmul.f32 %v1204, 0.5
    %v1209 = vtanh.pop %v1207
    %v1210 = vtanh.pop %v1208
    %v1211 = vadd.f32 %v1209, 1.0
    %v1212 = vadd.f32 %v1210, 1.0
    %v1213 = vmul.f32 %v1211, 0.5
    %v1214 = vmul.f32 %v1212, 0.5
    %v1215 = vtanh.pop %v1205
    %v1216 = vmul.f32 %v1206, 0.5
    %v1217 = vtanh.pop %v1216
    %v1218 = vadd.f32 %v1217, 1.0
    %v1219 = vmul.f32 %v1218, 0.5
    %v1220 = vmul.f32 %v1214, %v1053
    %v1221 = vmul.f32 %v1213, %v1215
    %v1222 = vadd.f32 %v1220, %v1221
    %v1223 = vtanh.pop %v1222
    %v1224 = vmul.f32 %v1219, %v1223
    %vm1225 = vcmp.gt.s32.totalorder %v452, 3
    %v1226 = vsel %vm1225, 1, 0
    %1227 = vset.pattern.permute.xlu0 0
    %1228 = vperm.xlu0 %1227, %v1226
    %v1229 = vpop.permute.xlu0 %1228
    %vm1230 = vcmp.eq.s32.totalorder %v1229, 1
    %v1231 = vsel %vm1230, %v1224, %v1052
    %v1232 = vsel %vm1230, %v1222, %v1053
    %s1233 = smul.u32 4, 4
    %s1234 = smul.addr %s1233, 8
    %s1235 = scalar_lea.vmem [#allocation2], %s1234
    %v1236 = vld [vmem:[%s1235] sm:$0xff]
    %v1237 = vld [vmem:[%s1235 + $0x8] sm:$0xff]
    %v1238 = vld [vmem:[%s1235 + $0x10] sm:$0xff]
    %v1239 = vld [vmem:[%s1235 + $0x18] sm:$0xff]
    %1240 = vmatprep.subr.mxu0 %v461
    %1241 = vmatpush1.msra.mxu0 %v460
    %1242 = vmatprep.subr.mxu0 %v465
    %1243 = vmatpush1.msra.mxu0 %v464
    %1244 = vmatprep.subr.mxu0 %v469
    %1245 = vmatpush1.msra.mxu0 %v468
    %1246 = vmatprep.subr.mxu0 %v473
    %1247 = vmatpush1.msra.mxu0 %v472
    %1248 = vmatprep.subr.mxu0 %v477
    %1249 = vmatpush1.msra.mxu0 %v476
    %1250 = vmatprep.subr.mxu0 %v481
    %1251 = vmatpush1.msra.mxu0 %v480
    %1252 = vmatprep.subr.mxu0 %v485
    %1253 = vmatpush1.msra.mxu0 %v484
    %1254 = vmatprep.subr.mxu0 %v489
    %1255 = vmatpush1.msra.mxu0 %v488
    %1256 = vmatprep.subr.mxu0 %v493
    %1257 = vmatpush1.msra.mxu0 %v492
    %1258 = vmatprep.subr.mxu0 %v497
    %1259 = vmatpush1.msra.mxu0 %v496
    %1260 = vmatprep.subr.mxu0 %v501
    %1261 = vmatpush1.msra.mxu0 %v500
    %1262 = vmatprep.subr.mxu0 %v505
    %1263 = vmatpush1.msra.mxu0 %v504
    %1264 = vmatprep.subr.mxu0 %v509
    %1265 = vmatpush1.msra.mxu0 %v508
    %1266 = vmatprep.subr.mxu0 %v513
    %1267 = vmatpush1.msra.mxu0 %v512
    %1268 = vmatprep.subr.mxu0 %v517
    %1269 = vmatpush1.msra.mxu0 %v516
    %1270 = vmatprep.subr.mxu0 %v521
    %1271 = vmatpush1.msra.mxu0 %v520
    %1272 = vmatprep.subr.mxu0 0.0
    %1273 = vmatpush1.msra.mxu0 0.0
    %1274 = vmatprep.subr.mxu0 0.0
    %1275 = vmatpush1.msra.mxu0 0.0
    %1276 = vmatprep.subr.mxu0 0.0
    %1277 = vmatpush1.msra.mxu0 0.0
    %1278 = vmatprep.subr.mxu0 0.0
    %1279 = vmatpush1.msra.mxu0 0.0
    %1280 = vmatprep.subr.mxu0 0.0
    %1281 = vmatpush1.msra.mxu0 0.0
    %1282 = vmatprep.subr.mxu0 0.0
    %1283 = vmatpush1.msra.mxu0 0.0
    %1284 = vmatprep.subr.mxu0 0.0
    %1285 = vmatpush1.msra.mxu0 0.0
    %1286 = vmatprep.subr.mxu0 0.0
    %1287 = vmatpush1.msra.mxu0 0.0
    %1288 = vmatprep.subr.mxu0 0.0
    %1289 = vmatpush1.msra.mxu0 0.0
    %1290 = vmatprep.subr.mxu0 0.0
    %1291 = vmatpush1.msra.mxu0 0.0
    %1292 = vmatprep.subr.mxu0 0.0
    %1293 = vmatpush1.msra.mxu0 0.0
    %1294 = vmatprep.subr.mxu0 0.0
    %1295 = vmatpush1.msra.mxu0 0.0
    %1296 = vmatprep.subr.mxu0 0.0
    %1297 = vmatpush1.msra.mxu0 0.0
    %1298 = vmatprep.subr.mxu0 0.0
    %1299 = vmatpush1.msra.mxu0 0.0
    %1300 = vmatprep.subr.mxu0 0.0
    %1301 = vmatpush1.msra.mxu0 0.0
    %1302 = vmatprep.subr.mxu0 0.0
    %1303 = vmatpush1.msra.mxu0 0.0
    %1304 = vmatprep.mubr.f32.mxu0 0.0
    %1305 = vmatmul.mubr.f32.gmra.mrb[0].mxu0 %v1231
    %v1306 = vpop.f32.mrb[0].mxu0
    %v1307 = vadd.f32 0.0, %v1306
    %v1308 = vpop.f32.mrb[0].mxu0
    %v1309 = vadd.f32 0.0, %v1308
    %1310 = vdwg.mxu0
    %1311 = vmatprep.subr.mxu0 %v463
    %1312 = vmatpush1.msra.mxu0 %v462
    %1313 = vmatprep.subr.mxu0 %v467
    %1314 = vmatpush1.msra.mxu0 %v466
    %1315 = vmatprep.subr.mxu0 %v471
    %1316 = vmatpush1.msra.mxu0 %v470
    %1317 = vmatprep.subr.mxu0 %v475
    %1318 = vmatpush1.msra.mxu0 %v474
    %1319 = vmatprep.subr.mxu0 %v479
    %1320 = vmatpush1.msra.mxu0 %v478
    %1321 = vmatprep.subr.mxu0 %v483
    %1322 = vmatpush1.msra.mxu0 %v482
    %1323 = vmatprep.subr.mxu0 %v487
    %1324 = vmatpush1.msra.mxu0 %v486
    %1325 = vmatprep.subr.mxu0 %v491
    %1326 = vmatpush1.msra.mxu0 %v490
    %1327 = vmatprep.subr.mxu0 %v495
    %1328 = vmatpush1.msra.mxu0 %v494
    %1329 = vmatprep.subr.mxu0 %v499
    %1330 = vmatpush1.msra.mxu0 %v498
    %1331 = vmatprep.subr.mxu0 %v503
    %1332 = vmatpush1.msra.mxu0 %v502
    %1333 = vmatprep.subr.mxu0 %v507
    %1334 = vmatpush1.msra.mxu0 %v506
    %1335 = vmatprep.subr.mxu0 %v511
    %1336 = vmatpush1.msra.mxu0 %v510
    %1337 = vmatprep.subr.mxu0 %v515
    %1338 = vmatpush1.msra.mxu0 %v514
    %1339 = vmatprep.subr.mxu0 %v519
    %1340 = vmatpush1.msra.mxu0 %v518
    %1341 = vmatprep.subr.mxu0 %v523
    %1342 = vmatpush1.msra.mxu0 %v522
    %1343 = vmatprep.subr.mxu0 0.0
    %1344 = vmatpush1.msra.mxu0 0.0
    %1345 = vmatprep.subr.mxu0 0.0
    %1346 = vmatpush1.msra.mxu0 0.0
    %1347 = vmatprep.subr.mxu0 0.0
    %1348 = vmatpush1.msra.mxu0 0.0
    %1349 = vmatprep.subr.mxu0 0.0
    %1350 = vmatpush1.msra.mxu0 0.0
    %1351 = vmatprep.subr.mxu0 0.0
    %1352 = vmatpush1.msra.mxu0 0.0
    %1353 = vmatprep.subr.mxu0 0.0
    %1354 = vmatpush1.msra.mxu0 0.0
    %1355 = vmatprep.subr.mxu0 0.0
    %1356 = vmatpush1.msra.mxu0 0.0
    %1357 = vmatprep.subr.mxu0 0.0
    %1358 = vmatpush1.msra.mxu0 0.0
    %1359 = vmatprep.subr.mxu0 0.0
    %1360 = vmatpush1.msra.mxu0 0.0
    %1361 = vmatprep.subr.mxu0 0.0
    %1362 = vmatpush1.msra.mxu0 0.0
    %1363 = vmatprep.subr.mxu0 0.0
    %1364 = vmatpush1.msra.mxu0 0.0
    %1365 = vmatprep.subr.mxu0 0.0
    %1366 = vmatpush1.msra.mxu0 0.0
    %1367 = vmatprep.subr.mxu0 0.0
    %1368 = vmatpush1.msra.mxu0 0.0
    %1369 = vmatprep.subr.mxu0 0.0
    %1370 = vmatpush1.msra.mxu0 0.0
    %1371 = vmatprep.subr.mxu0 0.0
    %1372 = vmatpush1.msra.mxu0 0.0
    %1373 = vmatprep.subr.mxu0 0.0
    %1374 = vmatpush1.msra.mxu0 0.0
    %1375 = vmatprep.mubr.f32.mxu0 0.0
    %1376 = vmatmul.mubr.f32.gmra.mrb[0].mxu0 %v1231
    %v1377 = vpop.f32.mrb[0].mxu0
    %v1378 = vadd.f32 0.0, %v1377
    %v1379 = vpop.f32.mrb[0].mxu0
    %v1380 = vadd.f32 0.0, %v1379
    %1381 = vdwg.mxu0
    %v1382 = vadd.f32 %v1236, %v1307
    %v1383 = vadd.f32 %v1237, %v1309
    %v1384 = vadd.f32 %v1238, %v1378
    %v1385 = vadd.f32 %v1239, %v1380
    %v1386 = vmul.f32 %v1382, 0.5
    %v1387 = vmul.f32 %v1383, 0.5
    %v1388 = vtanh.pop %v1386
    %v1389 = vtanh.pop %v1387
    %v1390 = vadd.f32 %v1388, 1.0
    %v1391 = vadd.f32 %v1389, 1.0
    %v1392 = vmul.f32 %v1390, 0.5
    %v1393 = vmul.f32 %v1391, 0.5
    %v1394 = vtanh.pop %v1384
    %v1395 = vmul.f32 %v1385, 0.5
    %v1396 = vtanh.pop %v1395
    %v1397 = vadd.f32 %v1396, 1.0
    %v1398 = vmul.f32 %v1397, 0.5
    %v1399 = vmul.f32 %v1393, %v1232
    %v1400 = vmul.f32 %v1392, %v1394
    %v1401 = vadd.f32 %v1399, %v1400
    %v1402 = vtanh.pop %v1401
    %v1403 = vmul.f32 %v1398, %v1402
    %vm1404 = vcmp.gt.s32.totalorder %v452, 4
    %v1405 = vsel %vm1404, 1, 0
    %1406 = vset.pattern.permute.xlu0 0
    %1407 = vperm.xlu0 %1406, %v1405
    %v1408 = vpop.permute.xlu0 %1407
    %vm1409 = vcmp.eq.s32.totalorder %v1408, 1
    %v1410 = vsel %vm1409, %v1403, %v1231
    %v1411 = vsel %vm1409, %v1401, %v1232
    %s1412 = smul.u32 5, 4
    %s1413 = smul.addr %s1412, 8
    %s1414 = scalar_lea.vmem [#allocation2], %s1413
    %v1415 = vld [vmem:[%s1414] sm:$0xff]
    %v1416 = vld [vmem:[%s1414 + $0x8] sm:$0xff]
    %v1417 = vld [vmem:[%s1414 + $0x10] sm:$0xff]
    %v1418 = vld [vmem:[%s1414 + $0x18] sm:$0xff]
    %1419 = vmatprep.subr.mxu0 %v461
    %1420 = vmatpush1.msra.mxu0 %v460
    %1421 = vmatprep.subr.mxu0 %v465
    %1422 = vmatpush1.msra.mxu0 %v464
    %1423 = vmatprep.subr.mxu0 %v469
    %1424 = vmatpush1.msra.mxu0 %v468
    %1425 = vmatprep.subr.mxu0 %v473
    %1426 = vmatpush1.msra.mxu0 %v472
    %1427 = vmatprep.subr.mxu0 %v477
    %1428 = vmatpush1.msra.mxu0 %v476
    %1429 = vmatprep.subr.mxu0 %v481
    %1430 = vmatpush1.msra.mxu0 %v480
    %1431 = vmatprep.subr.mxu0 %v485
    %1432 = vmatpush1.msra.mxu0 %v484
    %1433 = vmatprep.subr.mxu0 %v489
    %1434 = vmatpush1.msra.mxu0 %v488
    %1435 = vmatprep.subr.mxu0 %v493
    %1436 = vmatpush1.msra.mxu0 %v492
    %1437 = vmatprep.subr.mxu0 %v497
    %1438 = vmatpush1.msra.mxu0 %v496
    %1439 = vmatprep.subr.mxu0 %v501
    %1440 = vmatpush1.msra.mxu0 %v500
    %1441 = vmatprep.subr.mxu0 %v505
    %1442 = vmatpush1.msra.mxu0 %v504
    %1443 = vmatprep.subr.mxu0 %v509
    %1444 = vmatpush1.msra.mxu0 %v508
    %1445 = vmatprep.subr.mxu0 %v513
    %1446 = vmatpush1.msra.mxu0 %v512
    %1447 = vmatprep.subr.mxu0 %v517
    %1448 = vmatpush1.msra.mxu0 %v516
    %1449 = vmatprep.subr.mxu0 %v521
    %1450 = vmatpush1.msra.mxu0 %v520
    %1451 = vmatprep.subr.mxu0 0.0
    %1452 = vmatpush1.msra.mxu0 0.0
    %1453 = vmatprep.subr.mxu0 0.0
    %1454 = vmatpush1.msra.mxu0 0.0
    %1455 = vmatprep.subr.mxu0 0.0
    %1456 = vmatpush1.msra.mxu0 0.0
    %1457 = vmatprep.subr.mxu0 0.0
    %1458 = vmatpush1.msra.mxu0 0.0
    %1459 = vmatprep.subr.mxu0 0.0
    %1460 = vmatpush1.msra.mxu0 0.0
    %1461 = vmatprep.subr.mxu0 0.0
    %1462 = vmatpush1.msra.mxu0 0.0
    %1463 = vmatprep.subr.mxu0 0.0
    %1464 = vmatpush1.msra.mxu0 0.0
    %1465 = vmatprep.subr.mxu0 0.0
    %1466 = vmatpush1.msra.mxu0 0.0
    %1467 = vmatprep.subr.mxu0 0.0
    %1468 = vmatpush1.msra.mxu0 0.0
    %1469 = vmatprep.subr.mxu0 0.0
    %1470 = vmatpush1.msra.mxu0 0.0
    %1471 = vmatprep.subr.mxu0 0.0
    %1472 = vmatpush1.msra.mxu0 0.0
    %1473 = vmatprep.subr.mxu0 0.0
    %1474 = vmatpush1.msra.mxu0 0.0
    %1475 = vmatprep.subr.mxu0 0.0
    %1476 = vmatpush1.msra.mxu0 0.0
    %1477 = vmatprep.subr.mxu0 0.0
    %1478 = vmatpush1.msra.mxu0 0.0
    %1479 = vmatprep.subr.mxu0 0.0
    %1480 = vmatpush1.msra.mxu0 0.0
    %1481 = vmatprep.subr.mxu0 0.0
    %1482 = vmatpush1.msra.mxu0 0.0
    %1483 = vmatprep.mubr.f32.mxu0 0.0
    %1484 = vmatmul.mubr.f32.gmra.mrb[0].mxu0 %v1410
    %v1485 = vpop.f32.mrb[0].mxu0
    %v1486 = vadd.f32 0.0, %v1485
    %v1487 = vpop.f32.mrb[0].mxu0
    %v1488 = vadd.f32 0.0, %v1487
    %1489 = vdwg.mxu0
    %1490 = vmatprep.subr.mxu0 %v463
    %1491 = vmatpush1.msra.mxu0 %v462
    %1492 = vmatprep.subr.mxu0 %v467
    %1493 = vmatpush1.msra.mxu0 %v466
    %1494 = vmatprep.subr.mxu0 %v471
    %1495 = vmatpush1.msra.mxu0 %v470
    %1496 = vmatprep.subr.mxu0 %v475
    %1497 = vmatpush1.msra.mxu0 %v474
    %1498 = vmatprep.subr.mxu0 %v479
    %1499 = vmatpush1.msra.mxu0 %v478
    %1500 = vmatprep.subr.mxu0 %v483
    %1501 = vmatpush1.msra.mxu0 %v482
    %1502 = vmatprep.subr.mxu0 %v487
    %1503 = vmatpush1.msra.mxu0 %v486
    %1504 = vmatprep.subr.mxu0 %v491
    %1505 = vmatpush1.msra.mxu0 %v490
    %1506 = vmatprep.subr.mxu0 %v495
    %1507 = vmatpush1.msra.mxu0 %v494
    %1508 = vmatprep.subr.mxu0 %v499
    %1509 = vmatpush1.msra.mxu0 %v498
    %1510 = vmatprep.subr.mxu0 %v503
    %1511 = vmatpush1.msra.mxu0 %v502
    %1512 = vmatprep.subr.mxu0 %v507
    %1513 = vmatpush1.msra.mxu0 %v506
    %1514 = vmatprep.subr.mxu0 %v511
    %1515 = vmatpush1.msra.mxu0 %v510
    %1516 = vmatprep.subr.mxu0 %v515
    %1517 = vmatpush1.msra.mxu0 %v514
    %1518 = vmatprep.subr.mxu0 %v519
    %1519 = vmatpush1.msra.mxu0 %v518
    %1520 = vmatprep.subr.mxu0 %v523
    %1521 = vmatpush1.msra.mxu0 %v522
    %1522 = vmatprep.subr.mxu0 0.0
    %1523 = vmatpush1.msra.mxu0 0.0
    %1524 = vmatprep.subr.mxu0 0.0
    %1525 = vmatpush1.msra.mxu0 0.0
    %1526 = vmatprep.subr.mxu0 0.0
    %1527 = vmatpush1.msra.mxu0 0.0
    %1528 = vmatprep.subr.mxu0 0.0
    %1529 = vmatpush1.msra.mxu0 0.0
    %1530 = vmatprep.subr.mxu0 0.0
    %1531 = vmatpush1.msra.mxu0 0.0
    %1532 = vmatprep.subr.mxu0 0.0
    %1533 = vmatpush1.msra.mxu0 0.0
    %1534 = vmatprep.subr.mxu0 0.0
    %1535 = vmatpush1.msra.mxu0 0.0
    %1536 = vmatprep.subr.mxu0 0.0
    %1537 = vmatpush1.msra.mxu0 0.0
    %1538 = vmatprep.subr.mxu0 0.0
    %1539 = vmatpush1.msra.mxu0 0.0
    %1540 = vmatprep.subr.mxu0 0.0
    %1541 = vmatpush1.msra.mxu0 0.0
    %1542 = vmatprep.subr.mxu0 0.0
    %1543 = vmatpush1.msra.mxu0 0.0
    %1544 = vmatprep.subr.mxu0 0.0
    %1545 = vmatpush1.msra.mxu0 0.0
    %1546 = vmatprep.subr.mxu0 0.0
    %1547 = vmatpush1.msra.mxu0 0.0
    %1548 = vmatprep.subr.mxu0 0.0
    %1549 = vmatpush1.msra.mxu0 0.0
    %1550 = vmatprep.subr.mxu0 0.0
    %1551 = vmatpush1.msra.mxu0 0.0
    %1552 = vmatprep.subr.mxu0 0.0
    %1553 = vmatpush1.msra.mxu0 0.0
    %1554 = vmatprep.mubr.f32.mxu0 0.0
    %1555 = vmatmul.mubr.f32.gmra.mrb[0].mxu0 %v1410
    %v1556 = vpop.f32.mrb[0].mxu0
    %v1557 = vadd.f32 0.0, %v1556
    %v1558 = vpop.f32.mrb[0].mxu0
    %v1559 = vadd.f32 0.0, %v1558
    %1560 = vdwg.mxu0
    %v1561 = vadd.f32 %v1415, %v1486
    %v1562 = vadd.f32 %v1416, %v1488
    %v1563 = vadd.f32 %v1417, %v1557
    %v1564 = vadd.f32 %v1418, %v1559
    %v1565 = vmul.f32 %v1561, 0.5
    %v1566 = vmul.f32 %v1562, 0.5
    %v1567 = vtanh.pop %v1565
    %v1568 = vtanh.pop %v1566
    %v1569 = vadd.f32 %v1567, 1.0
    %v1570 = vadd.f32 %v1568, 1.0
    %v1571 = vmul.f32 %v1569, 0.5
    %v1572 = vmul.f32 %v1570, 0.5
    %v1573 = vtanh.pop %v1563
    %v1574 = vmul.f32 %v1564, 0.5
    %v1575 = vtanh.pop %v1574
    %v1576 = vadd.f32 %v1575, 1.0
    %v1577 = vmul.f32 %v1576, 0.5
    %v1578 = vmul.f32 %v1572, %v1411
    %v1579 = vmul.f32 %v1571, %v1573
    %v1580 = vadd.f32 %v1578, %v1579
    %v1581 = vtanh.pop %v1580
    %v1582 = vmul.f32 %v1577, %v1581
    %vm1583 = vcmp.gt.s32.totalorder %v452, 5
    %v1584 = vsel %vm1583, 1, 0
    %1585 = vset.pattern.permute.xlu0 0
    %1586 = vperm.xlu0 %1585, %v1584
    %v1587 = vpop.permute.xlu0 %1586
    %vm1588 = vcmp.eq.s32.totalorder %v1587, 1
    %v1589 = vsel %vm1588, %v1582, %v1410
    %v1590 = vsel %vm1588, %v1580, %v1411
    %s1591 = smul.u32 6, 4
    %s1592 = smul.addr %s1591, 8
    %s1593 = scalar_lea.vmem [#allocation2], %s1592
    %v1594 = vld [vmem:[%s1593] sm:$0xff]
    %v1595 = vld [vmem:[%s1593 + $0x8] sm:$0xff]
    %v1596 = vld [vmem:[%s1593 + $0x10] sm:$0xff]
    %v1597 = vld [vmem:[%s1593 + $0x18] sm:$0xff]
    %1598 = vmatprep.subr.mxu0 %v461
    %1599 = vmatpush1.msra.mxu0 %v460
    %1600 = vmatprep.subr.mxu0 %v465
    %1601 = vmatpush1.msra.mxu0 %v464
    %1602 = vmatprep.subr.mxu0 %v469
    %1603 = vmatpush1.msra.mxu0 %v468
    %1604 = vmatprep.subr.mxu0 %v473
    %1605 = vmatpush1.msra.mxu0 %v472
    %1606 = vmatprep.subr.mxu0 %v477
    %1607 = vmatpush1.msra.mxu0 %v476
    %1608 = vmatprep.subr.mxu0 %v481
    %1609 = vmatpush1.msra.mxu0 %v480
    %1610 = vmatprep.subr.mxu0 %v485
    %1611 = vmatpush1.msra.mxu0 %v484
    %1612 = vmatprep.subr.mxu0 %v489
    %1613 = vmatpush1.msra.mxu0 %v488
    %1614 = vmatprep.subr.mxu0 %v493
    %1615 = vmatpush1.msra.mxu0 %v492
    %1616 = vmatprep.subr.mxu0 %v497
    %1617 = vmatpush1.msra.mxu0 %v496
    %1618 = vmatprep.subr.mxu0 %v501
    %1619 = vmatpush1.msra.mxu0 %v500
    %1620 = vmatprep.subr.mxu0 %v505
    %1621 = vmatpush1.msra.mxu0 %v504
    %1622 = vmatprep.subr.mxu0 %v509
    %1623 = vmatpush1.msra.mxu0 %v508
    %1624 = vmatprep.subr.mxu0 %v513
    %1625 = vmatpush1.msra.mxu0 %v512
    %1626 = vmatprep.subr.mxu0 %v517
    %1627 = vmatpush1.msra.mxu0 %v516
    %1628 = vmatprep.subr.mxu0 %v521
    %1629 = vmatpush1.msra.mxu0 %v520
    %1630 = vmatprep.subr.mxu0 0.0
    %1631 = vmatpush1.msra.mxu0 0.0
    %1632 = vmatprep.subr.mxu0 0.0
    %1633 = vmatpush1.msra.mxu0 0.0
    %1634 = vmatprep.subr.mxu0 0.0
    %1635 = vmatpush1.msra.mxu0 0.0
    %1636 = vmatprep.subr.mxu0 0.0
    %1637 = vmatpush1.msra.mxu0 0.0
    %1638 = vmatprep.subr.mxu0 0.0
    %1639 = vmatpush1.msra.mxu0 0.0
    %1640 = vmatprep.subr.mxu0 0.0
    %1641 = vmatpush1.msra.mxu0 0.0
    %1642 = vmatprep.subr.mxu0 0.0
    %1643 = vmatpush1.msra.mxu0 0.0
    %1644 = vmatprep.subr.mxu0 0.0
    %1645 = vmatpush1.msra.mxu0 0.0
    %1646 = vmatprep.subr.mxu0 0.0
    %1647 = vmatpush1.msra.mxu0 0.0
    %1648 = vmatprep.subr.mxu0 0.0
    %1649 = vmatpush1.msra.mxu0 0.0
    %1650 = vmatprep.subr.mxu0 0.0
    %1651 = vmatpush1.msra.mxu0 0.0
    %1652 = vmatprep.subr.mxu0 0.0
    %1653 = vmatpush1.msra.mxu0 0.0
    %1654 = vmatprep.subr.mxu0 0.0
    %1655 = vmatpush1.msra.mxu0 0.0
    %1656 = vmatprep.subr.mxu0 0.0
    %1657 = vmatpush1.msra.mxu0 0.0
    %1658 = vmatprep.subr.mxu0 0.0
    %1659 = vmatpush1.msra.mxu0 0.0
    %1660 = vmatprep.subr.mxu0 0.0
    %1661 = vmatpush1.msra.mxu0 0.0
    %1662 = vmatprep.mubr.f32.mxu0 0.0
    %1663 = vmatmul.mubr.f32.gmra.mrb[0].mxu0 %v1589
    %v1664 = vpop.f32.mrb[0].mxu0
    %v1665 = vadd.f32 0.0, %v1664
    %v1666 = vpop.f32.mrb[0].mxu0
    %v1667 = vadd.f32 0.0, %v1666
    %1668 = vdwg.mxu0
    %1669 = vmatprep.subr.mxu0 %v463
    %1670 = vmatpush1.msra.mxu0 %v462
    %1671 = vmatprep.subr.mxu0 %v467
    %1672 = vmatpush1.msra.mxu0 %v466
    %1673 = vmatprep.subr.mxu0 %v471
    %1674 = vmatpush1.msra.mxu0 %v470
    %1675 = vmatprep.subr.mxu0 %v475
    %1676 = vmatpush1.msra.mxu0 %v474
    %1677 = vmatprep.subr.mxu0 %v479
    %1678 = vmatpush1.msra.mxu0 %v478
    %1679 = vmatprep.subr.mxu0 %v483
    %1680 = vmatpush1.msra.mxu0 %v482
    %1681 = vmatprep.subr.mxu0 %v487
    %1682 = vmatpush1.msra.mxu0 %v486
    %1683 = vmatprep.subr.mxu0 %v491
    %1684 = vmatpush1.msra.mxu0 %v490
    %1685 = vmatprep.subr.mxu0 %v495
    %1686 = vmatpush1.msra.mxu0 %v494
    %1687 = vmatprep.subr.mxu0 %v499
    %1688 = vmatpush1.msra.mxu0 %v498
    %1689 = vmatprep.subr.mxu0 %v503
    %1690 = vmatpush1.msra.mxu0 %v502
    %1691 = vmatprep.subr.mxu0 %v507
    %1692 = vmatpush1.msra.mxu0 %v506
    %1693 = vmatprep.subr.mxu0 %v511
    %1694 = vmatpush1.msra.mxu0 %v510
    %1695 = vmatprep.subr.mxu0 %v515
    %1696 = vmatpush1.msra.mxu0 %v514
    %1697 = vmatprep.subr.mxu0 %v519
    %1698 = vmatpush1.msra.mxu0 %v518
    %1699 = vmatprep.subr.mxu0 %v523
    %1700 = vmatpush1.msra.mxu0 %v522
    %1701 = vmatprep.subr.mxu0 0.0
    %1702 = vmatpush1.msra.mxu0 0.0
    %1703 = vmatprep.subr.mxu0 0.0
    %1704 = vmatpush1.msra.mxu0 0.0
    %1705 = vmatprep.subr.mxu0 0.0
    %1706 = vmatpush1.msra.mxu0 0.0
    %1707 = vmatprep.subr.mxu0 0.0
    %1708 = vmatpush1.msra.mxu0 0.0
    %1709 = vmatprep.subr.mxu0 0.0
    %1710 = vmatpush1.msra.mxu0 0.0
    %1711 = vmatprep.subr.mxu0 0.0
    %1712 = vmatpush1.msra.mxu0 0.0
    %1713 = vmatprep.subr.mxu0 0.0
    %1714 = vmatpush1.msra.mxu0 0.0
    %1715 = vmatprep.subr.mxu0 0.0
    %1716 = vmatpush1.msra.mxu0 0.0
    %1717 = vmatprep.subr.mxu0 0.0
    %1718 = vmatpush1.msra.mxu0 0.0
    %1719 = vmatprep.subr.mxu0 0.0
    %1720 = vmatpush1.msra.mxu0 0.0
    %1721 = vmatprep.subr.mxu0 0.0
    %1722 = vmatpush1.msra.mxu0 0.0
    %1723 = vmatprep.subr.mxu0 0.0
    %1724 = vmatpush1.msra.mxu0 0.0
    %1725 = vmatprep.subr.mxu0 0.0
    %1726 = vmatpush1.msra.mxu0 0.0
    %1727 = vmatprep.subr.mxu0 0.0
    %1728 = vmatpush1.msra.mxu0 0.0
    %1729 = vmatprep.subr.mxu0 0.0
    %1730 = vmatpush1.msra.mxu0 0.0
    %1731 = vmatprep.subr.mxu0 0.0
    %1732 = vmatpush1.msra.mxu0 0.0
    %1733 = vmatprep.mubr.f32.mxu0 0.0
    %1734 = vmatmul.mubr.f32.gmra.mrb[0].mxu0 %v1589
    %v1735 = vpop.f32.mrb[0].mxu0
    %v1736 = vadd.f32 0.0, %v1735
    %v1737 = vpop.f32.mrb[0].mxu0
    %v1738 = vadd.f32 0.0, %v1737
    %1739 = vdwg.mxu0
    %v1740 = vadd.f32 %v1594, %v1665
    %v1741 = vadd.f32 %v1595, %v1667
    %v1742 = vadd.f32 %v1596, %v1736
    %v1743 = vadd.f32 %v1597, %v1738
    %v1744 = vmul.f32 %v1740, 0.5
    %v1745 = vmul.f32 %v1741, 0.5
    %v1746 = vtanh.pop %v1744
    %v1747 = vtanh.pop %v1745
    %v1748 = vadd.f32 %v1746, 1.0
    %v1749 = vadd.f32 %v1747, 1.0
    %v1750 = vmul.f32 %v1748, 0.5
    %v1751 = vmul.f32 %v1749, 0.5
    %v1752 = vtanh.pop %v1742
    %v1753 = vmul.f32 %v1743, 0.5
    %v1754 = vtanh.pop %v1753
    %v1755 = vadd.f32 %v1754, 1.0
    %v1756 = vmul.f32 %v1755, 0.5
    %v1757 = vmul.f32 %v1751, %v1590
    %v1758 = vmul.f32 %v1750, %v1752
    %v1759 = vadd.f32 %v1757, %v1758
    %v1760 = vtanh.pop %v1759
    %v1761 = vmul.f32 %v1756, %v1760
    %vm1762 = vcmp.gt.s32.totalorder %v452, 6
    %v1763 = vsel %vm1762, 1, 0
    %1764 = vset.pattern.permute.xlu0 0
    %1765 = vperm.xlu0 %1764, %v1763
    %v1766 = vpop.permute.xlu0 %1765
    %vm1767 = vcmp.eq.s32.totalorder %v1766, 1
    %v1768 = vsel %vm1767, %v1761, %v1589
    %v1769 = vsel %vm1767, %v1759, %v1590
    %s1770 = smul.u32 7, 4
    %s1771 = smul.addr %s1770, 8
    %s1772 = scalar_lea.vmem [#allocation2], %s1771
    %v1773 = vld [vmem:[%s1772] sm:$0xff]
    %v1774 = vld [vmem:[%s1772 + $0x8] sm:$0xff]
    %v1775 = vld [vmem:[%s1772 + $0x10] sm:$0xff]
    %v1776 = vld [vmem:[%s1772 + $0x18] sm:$0xff]
    %1777 = vmatprep.subr.mxu0 %v461
    %1778 = vmatpush1.msra.mxu0 %v460
    %1779 = vmatprep.subr.mxu0 %v465
    %1780 = vmatpush1.msra.mxu0 %v464
    %1781 = vmatprep.subr.mxu0 %v469
    %1782 = vmatpush1.msra.mxu0 %v468
    %1783 = vmatprep.subr.mxu0 %v473
    %1784 = vmatpush1.msra.mxu0 %v472
    %1785 = vmatprep.subr.mxu0 %v477
    %1786 = vmatpush1.msra.mxu0 %v476
    %1787 = vmatprep.subr.mxu0 %v481
    %1788 = vmatpush1.msra.mxu0 %v480
    %1789 = vmatprep.subr.mxu0 %v485
    %1790 = vmatpush1.msra.mxu0 %v484
    %1791 = vmatprep.subr.mxu0 %v489
    %1792 = vmatpush1.msra.mxu0 %v488
    %1793 = vmatprep.subr.mxu0 %v493
    %1794 = vmatpush1.msra.mxu0 %v492
    %1795 = vmatprep.subr.mxu0 %v497
    %1796 = vmatpush1.msra.mxu0 %v496
    %1797 = vmatprep.subr.mxu0 %v501
    %1798 = vmatpush1.msra.mxu0 %v500
    %1799 = vmatprep.subr.mxu0 %v505
    %1800 = vmatpush1.msra.mxu0 %v504
    %1801 = vmatprep.subr.mxu0 %v509
    %1802 = vmatpush1.msra.mxu0 %v508
    %1803 = vmatprep.subr.mxu0 %v513
    %1804 = vmatpush1.msra.mxu0 %v512
    %1805 = vmatprep.subr.mxu0 %v517
    %1806 = vmatpush1.msra.mxu0 %v516
    %1807 = vmatprep.subr.mxu0 %v521
    %1808 = vmatpush1.msra.mxu0 %v520
    %1809 = vmatprep.subr.mxu0 0.0
    %1810 = vmatpush1.msra.mxu0 0.0
    %1811 = vmatprep.subr.mxu0 0.0
    %1812 = vmatpush1.msra.mxu0 0.0
    %1813 = vmatprep.subr.mxu0 0.0
    %1814 = vmatpush1.msra.mxu0 0.0
    %1815 = vmatprep.subr.mxu0 0.0
    %1816 = vmatpush1.msra.mxu0 0.0
    %1817 = vmatprep.subr.mxu0 0.0
    %1818 = vmatpush1.msra.mxu0 0.0
    %1819 = vmatprep.subr.mxu0 0.0
    %1820 = vmatpush1.msra.mxu0 0.0
    %1821 = vmatprep.subr.mxu0 0.0
    %1822 = vmatpush1.msra.mxu0 0.0
    %1823 = vmatprep.subr.mxu0 0.0
    %1824 = vmatpush1.msra.mxu0 0.0
    %1825 = vmatprep.subr.mxu0 0.0
    %1826 = vmatpush1.msra.mxu0 0.0
    %1827 = vmatprep.subr.mxu0 0.0
    %1828 = vmatpush1.msra.mxu0 0.0
    %1829 = vmatprep.subr.mxu0 0.0
    %1830 = vmatpush1.msra.mxu0 0.0
    %1831 = vmatprep.subr.mxu0 0.0
    %1832 = vmatpush1.msra.mxu0 0.0
    %1833 = vmatprep.subr.mxu0 0.0
    %1834 = vmatpush1.msra.mxu0 0.0
    %1835 = vmatprep.subr.mxu0 0.0
    %1836 = vmatpush1.msra.mxu0 0.0
    %1837 = vmatprep.subr.mxu0 0.0
    %1838 = vmatpush1.msra.mxu0 0.0
    %1839 = vmatprep.subr.mxu0 0.0
    %1840 = vmatpush1.msra.mxu0 0.0
    %1841 = vmatprep.mubr.f32.mxu0 0.0
    %1842 = vmatmul.mubr.f32.gmra.mrb[0].mxu0 %v1768
    %v1843 = vpop.f32.mrb[0].mxu0
    %v1844 = vadd.f32 0.0, %v1843
    %v1845 = vpop.f32.mrb[0].mxu0
    %v1846 = vadd.f32 0.0, %v1845
    %1847 = vdwg.mxu0
    %1848 = vmatprep.subr.mxu0 %v463
    %1849 = vmatpush1.msra.mxu0 %v462
    %1850 = vmatprep.subr.mxu0 %v467
    %1851 = vmatpush1.msra.mxu0 %v466
    %1852 = vmatprep.subr.mxu0 %v471
    %1853 = vmatpush1.msra.mxu0 %v470
    %1854 = vmatprep.subr.mxu0 %v475
    %1855 = vmatpush1.msra.mxu0 %v474
    %1856 = vmatprep.subr.mxu0 %v479
    %1857 = vmatpush1.msra.mxu0 %v478
    %1858 = vmatprep.subr.mxu0 %v483
    %1859 = vmatpush1.msra.mxu0 %v482
    %1860 = vmatprep.subr.mxu0 %v487
    %1861 = vmatpush1.msra.mxu0 %v486
    %1862 = vmatprep.subr.mxu0 %v491
    %1863 = vmatpush1.msra.mxu0 %v490
    %1864 = vmatprep.subr.mxu0 %v495
    %1865 = vmatpush1.msra.mxu0 %v494
    %1866 = vmatprep.subr.mxu0 %v499
    %1867 = vmatpush1.msra.mxu0 %v498
    %1868 = vmatprep.subr.mxu0 %v503
    %1869 = vmatpush1.msra.mxu0 %v502
    %1870 = vmatprep.subr.mxu0 %v507
    %1871 = vmatpush1.msra.mxu0 %v506
    %1872 = vmatprep.subr.mxu0 %v511
    %1873 = vmatpush1.msra.mxu0 %v510
    %1874 = vmatprep.subr.mxu0 %v515
    %1875 = vmatpush1.msra.mxu0 %v514
    %1876 = vmatprep.subr.mxu0 %v519
    %1877 = vmatpush1.msra.mxu0 %v518
    %1878 = vmatprep.subr.mxu0 %v523
    %1879 = vmatpush1.msra.mxu0 %v522
    %1880 = vmatprep.subr.mxu0 0.0
    %1881 = vmatpush1.msra.mxu0 0.0
    %1882 = vmatprep.subr.mxu0 0.0
    %1883 = vmatpush1.msra.mxu0 0.0
    %1884 = vmatprep.subr.mxu0 0.0
    %1885 = vmatpush1.msra.mxu0 0.0
    %1886 = vmatprep.subr.mxu0 0.0
    %1887 = vmatpush1.msra.mxu0 0.0
    %1888 = vmatprep.subr.mxu0 0.0
    %1889 = vmatpush1.msra.mxu0 0.0
    %1890 = vmatprep.subr.mxu0 0.0
    %1891 = vmatpush1.msra.mxu0 0.0
    %1892 = vmatprep.subr.mxu0 0.0
    %1893 = vmatpush1.msra.mxu0 0.0
    %1894 = vmatprep.subr.mxu0 0.0
    %1895 = vmatpush1.msra.mxu0 0.0
    %1896 = vmatprep.subr.mxu0 0.0
    %1897 = vmatpush1.msra.mxu0 0.0
    %1898 = vmatprep.subr.mxu0 0.0
    %1899 = vmatpush1.msra.mxu0 0.0
    %1900 = vmatprep.subr.mxu0 0.0
    %1901 = vmatpush1.msra.mxu0 0.0
    %1902 = vmatprep.subr.mxu0 0.0
    %1903 = vmatpush1.msra.mxu0 0.0
    %1904 = vmatprep.subr.mxu0 0.0
    %1905 = vmatpush1.msra.mxu0 0.0
    %1906 = vmatprep.subr.mxu0 0.0
    %1907 = vmatpush1.msra.mxu0 0.0
    %1908 = vmatprep.subr.mxu0 0.0
    %1909 = vmatpush1.msra.mxu0 0.0
    %1910 = vmatprep.subr.mxu0 0.0
    %1911 = vmatpush1.msra.mxu0 0.0
    %1912 = vmatprep.mubr.f32.mxu0 0.0
    %1913 = vmatmul.mubr.f32.gmra.mrb[0].mxu0 %v1768
    %v1914 = vpop.f32.mrb[0].mxu0
    %v1915 = vadd.f32 0.0, %v1914
    %v1916 = vpop.f32.mrb[0].mxu0
    %v1917 = vadd.f32 0.0, %v1916
    %1918 = vdwg.mxu0
    %v1919 = vadd.f32 %v1773, %v1844
    %v1920 = vadd.f32 %v1774, %v1846
    %v1921 = vadd.f32 %v1775, %v1915
    %v1922 = vadd.f32 %v1776, %v1917
    %v1923 = vmul.f32 %v1919, 0.5
    %v1924 = vmul.f32 %v1920, 0.5
    %v1925 = vtanh.pop %v1923
    %v1926 = vtanh.pop %v1924
    %v1927 = vadd.f32 %v1925, 1.0
    %v1928 = vadd.f32 %v1926, 1.0
    %v1929 = vmul.f32 %v1927, 0.5
    %v1930 = vmul.f32 %v1928, 0.5
    %v1931 = vtanh.pop %v1921
    %v1932 = vmul.f32 %v1922, 0.5
    %v1933 = vtanh.pop %v1932
    %v1934 = vadd.f32 %v1933, 1.0
    %v1935 = vmul.f32 %v1934, 0.5
    %v1936 = vmul.f32 %v1930, %v1769
    %v1937 = vmul.f32 %v1929, %v1931
    %v1938 = vadd.f32 %v1936, %v1937
    %v1939 = vtanh.pop %v1938
    %v1940 = vmul.f32 %v1935, %v1939
    %vm1941 = vcmp.gt.s32.totalorder %v452, 7
    %v1942 = vsel %vm1941, 1, 0
    %1943 = vset.pattern.permute.xlu0 0
    %1944 = vperm.xlu0 %1943, %v1942
    %v1945 = vpop.permute.xlu0 %1944
    %vm1946 = vcmp.eq.s32.totalorder %v1945, 1
    %v1947 = vsel %vm1946, %v1940, %v1768
    %v1948 = vld [vmem:[#allocation8] sm:$0xff]
    %v1949 = vld [vmem:[#allocation8 + $0x8] sm:$0xff]
    %v1950 = vld [vmem:[#allocation8 + $0x10] sm:$0xff]
    %v1951 = vld [vmem:[#allocation8 + $0x18] sm:$0xff]
    %v1952 = vld [vmem:[#allocation8 + $0x20] sm:$0xff]
    %v1953 = vld [vmem:[#allocation8 + $0x28] sm:$0xff]
    %v1954 = vld [vmem:[#allocation8 + $0x30] sm:$0xff]
    %v1955 = vld [vmem:[#allocation8 + $0x38] sm:$0xff]
    %v1956 = vld [vmem:[#allocation8 + $0x40] sm:$0xff]
    %v1957 = vld [vmem:[#allocation8 + $0x48] sm:$0xff]
    %v1958 = vld [vmem:[#allocation8 + $0x50] sm:$0xff]
    %v1959 = vld [vmem:[#allocation8 + $0x58] sm:$0xff]
    %v1960 = vld [vmem:[#allocation8 + $0x60] sm:$0xff]
    %v1961 = vld [vmem:[#allocation8 + $0x68] sm:$0xff]
    %v1962 = vld [vmem:[#allocation8 + $0x70] sm:$0xff]
    %v1963 = vld [vmem:[#allocation8 + $0x78] sm:$0xff]
    %v1964 = vld [vmem:[%s5] sm:$0x1]
    %v1966 = vlaneseq
    %v1967 = vshrl.u32 %v1966, 7
    %v1968 = vsub.s32 0, %v1967
    %v1969 = vrot.slane %v1964, %v1968
    %1971 = vmatprep.subr.mxu0 0.0
    %1972 = vmatpush1.msra.mxu0 %v1948
    %1973 = vmatprep.subr.mxu0 0.0
    %1974 = vmatpush1.msra.mxu0 %v1949
    %1975 = vmatprep.subr.mxu0 0.0
    %1976 = vmatpush1.msra.mxu0 %v1950
    %1977 = vmatprep.subr.mxu0 0.0
    %1978 = vmatpush1.msra.mxu0 %v1951
    %1979 = vmatprep.subr.mxu0 0.0
    %1980 = vmatpush1.msra.mxu0 %v1952
    %1981 = vmatprep.subr.mxu0 0.0
    %1982 = vmatpush1.msra.mxu0 %v1953
    %1983 = vmatprep.subr.mxu0 0.0
    %1984 = vmatpush1.msra.mxu0 %v1954
    %1985 = vmatprep.subr.mxu0 0.0
    %1986 = vmatpush1.msra.mxu0 %v1955
    %1987 = vmatprep.subr.mxu0 0.0
    %1988 = vmatpush1.msra.mxu0 %v1956
    %1989 = vmatprep.subr.mxu0 0.0
    %1990 = vmatpush1.msra.mxu0 %v1957
    %1991 = vmatprep.subr.mxu0 0.0
    %1992 = vmatpush1.msra.mxu0 %v1958
    %1993 = vmatprep.subr.mxu0 0.0
    %1994 = vmatpush1.msra.mxu0 %v1959
    %1995 = vmatprep.subr.mxu0 0.0
    %1996 = vmatpush1.msra.mxu0 %v1960
    %1997 = vmatprep.subr.mxu0 0.0
    %1998 = vmatpush1.msra.mxu0 %v1961
    %1999 = vmatprep.subr.mxu0 0.0
    %2000 = vmatpush1.msra.mxu0 %v1962
    %2001 = vmatprep.subr.mxu0 0.0
    %2002 = vmatpush1.msra.mxu0 %v1963
    %2003 = vmatprep.subr.mxu0 0.0
    %2004 = vmatpush1.msra.mxu0 0.0
    %2005 = vmatprep.subr.mxu0 0.0
    %2006 = vmatpush1.msra.mxu0 0.0
    %2007 = vmatprep.subr.mxu0 0.0
    %2008 = vmatpush1.msra.mxu0 0.0
    %2009 = vmatprep.subr.mxu0 0.0
    %2010 = vmatpush1.msra.mxu0 0.0
    %2011 = vmatprep.subr.mxu0 0.0
    %2012 = vmatpush1.msra.mxu0 0.0
    %2013 = vmatprep.subr.mxu0 0.0
    %2014 = vmatpush1.msra.mxu0 0.0
    %2015 = vmatprep.subr.mxu0 0.0
    %2016 = vmatpush1.msra.mxu0 0.0
    %2017 = vmatprep.subr.mxu0 0.0
    %2018 = vmatpush1.msra.mxu0 0.0
    %2019 = vmatprep.subr.mxu0 0.0
    %2020 = vmatpush1.msra.mxu0 0.0
    %2021 = vmatprep.subr.mxu0 0.0
    %2022 = vmatpush1.msra.mxu0 0.0
    %2023 = vmatprep.subr.mxu0 0.0
    %2024 = vmatpush1.msra.mxu0 0.0
    %2025 = vmatprep.subr.mxu0 0.0
    %2026 = vmatpush1.msra.mxu0 0.0
    %2027 = vmatprep.subr.mxu0 0.0
    %2028 = vmatpush1.msra.mxu0 0.0
    %2029 = vmatprep.subr.mxu0 0.0
    %2030 = vmatpush1.msra.mxu0 0.0
    %2031 = vmatprep.subr.mxu0 0.0
    %2032 = vmatpush1.msra.mxu0 0.0
    %2033 = vmatprep.subr.mxu0 0.0
    %2034 = vmatpush1.msra.mxu0 0.0
    %2035 = vmatprep.mubr.f32.mxu0 0.0
    %2036 = vmatmul.mubr.f32.gmra.mrb[0].mxu0 %v1947
    %v2037 = vpop.f32.mrb[0].mxu0
    %v2038 = vadd.f32 %v1969, %v2037
    %v2039 = vpop.f32.mrb[0].mxu0
    %2040 = vdwg.mxu0
    %v2041 = vmax.f32 %v2038, 0.0
    %v2042 = vld [vmem:[%s6] sm:$0x1]
    %v2044 = vlaneseq
    %v2045 = vshrl.u32 %v2044, 7
    %v2046 = vsub.s32 0, %v2045
    %v2047 = vrot.slane %v2042, %v2046
    %v2049 = vmul.f32 %v2041, %v2047
    %2050 = vadd.xlane.f32.xlu0 %v2049
    %v2051 = vpop.xlane.xlu0 %2050
    %v2052 = vld [vmem:[#allocation3] sm:$0x1]
    %v2054 = vlaneseq
    %v2055 = vshrl.u32 %v2054, 7
    %v2056 = vsub.s32 0, %v2055
    %v2057 = vrot.slane %v2052, %v2056
    %v2059 = vadd.f32 %v2051, %v2057
    %v2060 = vmul.f32 %v2059, 0.5
    %v2061 = vtanh.pop %v2060
    %v2062 = vadd.f32 %v2061, 1.0
    %v2063 = vmul.f32 %v2062, 0.5
    %vm2064 = vcmask 7168
    %2065 = vst.msk [vmem:[%s8] sm:$0xff] %vm2064, %v2063
    // Predicated region
    $region46: #{rnn_forward.1} parent=1 // pred_check
      _
    $region47: #{rnn_forward.1} parent=1 // pred_check_branch
      %2067 = sbr.rel (0) target = $region49
    $region48: #{rnn_forward.1} parent=1 // pred_region
      _
    $region49: #{rnn_forward.1} parent=1 // pred_fallthru
      _
    // Predicated region
    $region50: #{rnn_forward.1} parent=1 // pred_check
      _
    $region51: #{rnn_forward.1} parent=1 // pred_check_branch
      %2069 = sbr.rel (0) target = $region53
    $region52: #{rnn_forward.1} parent=1 // pred_region
      _
    $region53: #{rnn_forward.1} parent=1 // pred_fallthru
      _
    %2070 = vsyncpa [#allocation5], 1
    %2071 = vsyncpa [#allocation7], 1

</llo_original>
